<compile_context>
chip_gen: v6e
topology: v6e:2x2x1
jax: 0.10.0
libtpu: 0.0.40
codegen_flags: <defaults>
</compile_context>

<pallas_src>
import math

import jax
import jax.numpy as jnp
from jax import lax
from jax.experimental import pallas as pl
from jax.experimental.pallas import tpu as pltpu


def _round_up(x, m):
    return ((x + m - 1) // m) * m


def pam_kernel(gamma_ref, x_ref, wq_ref, wkv_ref, bq_ref, bkv_ref,
               o_ref, kv_sc):
    qi = pl.program_id(1)
    c_full = o_ref.shape[1]                 # C
    tq = o_ref.shape[2]                     # query tile (positions)
    c_red = wq_ref.shape[0]                 # C_ = C // 8
    c_pad = kv_sc.shape[0] - c_full         # aligned row offset of V in fused scratch

    # ---- fused K/V projection: computed once per batch element, cached ----
    @pl.when(qi == 0)
    def _():
        x_all = x_ref[0].astype(jnp.bfloat16)                          # (C, N)
        kv = jnp.dot(wkv_ref[...], x_all,
                     preferred_element_type=jnp.float32)               # (c_pad+C, N)
        kv_sc[...] = (kv + bkv_ref[...]).astype(jnp.bfloat16)

    # ---- query tile (channel-major); keep the f32 copy for the residual ----
    col0 = pl.multiple_of(qi * tq, tq)
    x_q = x_ref[0, :, pl.ds(col0, tq)]                                  # (C, TQ) f32
    q = jnp.dot(wq_ref[...], x_q.astype(jnp.bfloat16),
                preferred_element_type=jnp.float32) + bq_ref[...]       # (C_, TQ)

    # proj_query @ ave_I == (q - mean over C_) / C_ ; fold in 1/sqrt(C_) too.
    scale = 1.0 / (c_red * math.sqrt(c_red))
    qc = (q - jnp.mean(q, axis=0, keepdims=True)) * scale               # (C_, TQ) f32
    qc_t = jnp.transpose(qc).astype(jnp.bfloat16)                       # (TQ, C_) tiny XLU transpose

    # sigma = qc^T @ K -> (TQ, N)
    k_sc = kv_sc[:c_red, :]                                             # (C_, N) bf16
    sigma = jnp.dot(qc_t, k_sc, preferred_element_type=jnp.float32)

    # Softmax over keys: f32 max-shift, bf16 exp, f32 row-sum, EUP reciprocal.
    row_max = jnp.max(sigma, axis=-1, keepdims=True)                    # (TQ, 1) f32
    p = jnp.exp((sigma - row_max).astype(jnp.bfloat16))                 # (TQ, N) bf16
    row_sum = jnp.sum(p, axis=-1, keepdims=True, dtype=jnp.float32)     # (TQ, 1) f32
    attn = p * pl.reciprocal(row_sum, approx=True).astype(jnp.bfloat16) # (TQ, N) bf16

    # out = V @ attn^T -> (C, TQ): contracts the lane (N) axis of both operands.
    v_sc = kv_sc[c_pad:, :]                                             # (C, N) bf16
    out = lax.dot_general(v_sc, attn, (((1,), (1,)), ((), ())),
                          preferred_element_type=jnp.float32)           # (C, TQ) f32
    o_ref[0] = (gamma_ref[0] * out + x_q).astype(o_ref.dtype)


def pam_forward(x, wq, bq, wk, bk, wv, bv, gamma, *, tq=256):
    """x: (B, C, H, W) f32; wq/wk: (C//8, C); wv: (C, C); gamma: (1,)."""
    B, C, H, W = x.shape
    N = H * W
    C_ = wq.shape[0]
    tq = min(tq, N)
    assert N % tq == 0, "query tile must divide H*W"

    # Channel-major (B, C, N) in and out: free reshapes of NCHW, no HBM transposes.
    x_cn = x.reshape(B, C, N)

    # Pad K's row count to a bf16 vreg boundary (16 sublanes) so the V slice of
    # the fused scratch is aligned; the padding rows are zero and never read.
    c_pad = max(_round_up(C_, 16), 16)

    # Pre-cast weights to bf16; fuse Wk/Wv (and bk/bv) into one projection.
    wq_bf = wq.astype(jnp.bfloat16)
    wkv_bf = jnp.concatenate(
        [wk, jnp.zeros((c_pad - C_, C), wk.dtype), wv], axis=0).astype(jnp.bfloat16)
    bq_col = bq.reshape(C_, 1).astype(jnp.float32)
    bkv_col = jnp.concatenate(
        [bk, jnp.zeros((c_pad - C_,), bk.dtype), bv]).reshape(c_pad + C, 1).astype(jnp.float32)

    # Explicit VMEM budget: single-buffered f32 x slab + fused bf16 K/V scratch
    # + softmax/projection intermediates + double-buffered output tiles.
    x_slab = C * N * 4
    kv_bytes = (c_pad + C) * N * 2
    out_bytes = 2 * C * tq * 4
    w_bytes = 2 * (C_ * C + (c_pad + C) * C) * 2
    inter_bytes = 4 * tq * N * 4                      # sigma / p / attn + headroom
    proj_tmp = (c_pad + C) * N * 4 + C * N * 2        # f32 KV product + bf16 x cast
    misc = 2 * C * tq * 4 + (1 << 20)
    vmem_bytes = int(min(max(1.25 * (x_slab + kv_bytes + out_bytes + w_bytes
                                     + inter_bytes + proj_tmp + misc),
                             32 * 1024 * 1024),
                         128 * 1024 * 1024))

    cost = pl.CostEstimate(
        flops=B * (2 * (c_pad + C) * C * N + 2 * C_ * C * N
                   + 2 * N * N * C_ + 2 * N * N * C),
        transcendentals=B * (N * N + N),
        bytes_accessed=2 * B * C * N * 4
                       + (C_ + c_pad + C) * C * 2 + (C_ + c_pad + C) * 4 + 4)

    out = pl.pallas_call(
        pam_kernel,
        out_shape=jax.ShapeDtypeStruct((B, C, N), x.dtype),
        grid_spec=pltpu.PrefetchScalarGridSpec(
            num_scalar_prefetch=0,
            grid=(B, N // tq),
            in_specs=[
                pl.BlockSpec(memory_space=pltpu.MemorySpace.SMEM),        # gamma (1,)
                pl.BlockSpec((1, C, N), lambda b, qi: (b, 0, 0),
                             pipeline_mode=pl.Buffered(1)),               # x slab / batch
                pl.BlockSpec((C_, C), lambda b, qi: (0, 0),
                             pipeline_mode=pl.Buffered(1)),               # Wq (bf16)
                pl.BlockSpec((c_pad + C, C), lambda b, qi: (0, 0),
                             pipeline_mode=pl.Buffered(1)),               # Wk;Wv fused (bf16)
                pl.BlockSpec((C_, 1), lambda b, qi: (0, 0)),              # bq
                pl.BlockSpec((c_pad + C, 1), lambda b, qi: (0, 0)),       # bk;bv fused
            ],
            out_specs=pl.BlockSpec((1, C, tq), lambda b, qi: (b, 0, qi)),
            scratch_shapes=[
                pltpu.VMEM((c_pad + C, N), jnp.bfloat16),                 # cached K/V per batch
            ],
        ),
        compiler_params=pltpu.CompilerParams(
            # batch axis parallel (megacore); query-tile axis arbitrary so the
            # per-batch K/V scratch written at qi == 0 stays valid.
            dimension_semantics=("parallel", "arbitrary"),
            vmem_limit_bytes=vmem_bytes),
        cost_estimate=cost,
    )(gamma, x_cn, wq_bf, wkv_bf, bq_col, bkv_col)

    return out.reshape(B, C, H, W)


def pam_reference(x, wq, bq, wk, bk, wv, bv, gamma):
    """Pure-JAX f32 reference mirroring the PyTorch forward exactly."""
    B, C, H, W = x.shape
    N = H * W
    xf = x.reshape(B, C, N)
    C_ = wq.shape[0]
    proj_query = jnp.einsum('oc,bcn->bno', wq, xf) + bq                  # (B, N, C_)
    proj_key = jnp.einsum('oc,bcn->bon', wk, xf) + bk[:, None]           # (B, C_, N)
    ave_I = (1.0 / C_) * (jnp.eye(C_, dtype=x.dtype)
                          - (1.0 / C_) * jnp.ones((C_,), x.dtype))
    sigma = jnp.einsum('bno,op->bnp', proj_query, ave_I)
    sigma = jnp.einsum('bnp,bpm->bnm', sigma, proj_key) / math.sqrt(C_)
    attention = jax.nn.softmax(sigma, axis=-1)
    proj_value = jnp.einsum('oc,bcn->bon', wv, xf) + bv[:, None]         # (B, C, N)
    out = jnp.einsum('bcm,bnm->bcn', proj_value, attention).reshape(B, C, H, W)
    return gamma[0] * out + x


if __name__ == "__main__":
    key = jax.random.PRNGKey(0)
    B, C, H, W = 2, 32, 16, 16          # in_dim=32 -> reduced channels C//8 = 4
    C_ = C // 8
    ks = jax.random.split(key, 7)

    x = jax.random.normal(ks[0], (B, C, H, W), dtype=jnp.float32)
    # 1x1-conv weights (fan-in scaled) and biases, standing in for the module's convs.
    wq = jax.random.normal(ks[1], (C_, C), dtype=jnp.float32) / math.sqrt(C)
    wk = jax.random.normal(ks[2], (C_, C), dtype=jnp.float32) / math.sqrt(C)
    wv = jax.random.normal(ks[3], (C, C), dtype=jnp.float32) / math.sqrt(C)
    bq = 0.1 * jax.random.normal(ks[4], (C_,), dtype=jnp.float32)
    bk = 0.1 * jax.random.normal(ks[5], (C_,), dtype=jnp.float32)
    bv = 0.1 * jax.random.normal(ks[6], (C,), dtype=jnp.float32)

    # Module init: gamma = zeros(1) -> output must equal x exactly.
    gamma0 = jnp.zeros((1,), dtype=jnp.float32)
    out0 = pam_forward(x, wq, bq, wk, bk, wv, bv, gamma0)
    jax.block_until_ready(out0)
    assert jnp.allclose(out0, x, atol=1e-5, rtol=1e-5)

    # Nonzero gamma exercises the attention path; bf16 matmuls / bf16 softmax
    # and the approx reciprocal loosen the tolerance vs the f32 reference.
    gamma1 = jnp.array([0.5], dtype=jnp.float32)
    out1 = pam_forward(x, wq, bq, wk, bk, wv, bv, gamma1)
    jax.block_until_ready(out1)
    ref1 = pam_reference(x, wq, bq, wk, bk, wv, bv, gamma1)
    assert jnp.allclose(out1, ref1, atol=2e-2, rtol=2e-2)

    print("KERNEL_OK")
</pallas_src>

<mosaic_0001>
module attributes {stable_mosaic.version = 11 : i64} {
  func.func @pam_kernel(%arg0: i32, %arg1: i32, %arg2: memref<1xf32, #tpu.memory_space<smem>>, %arg3: memref<1x32x256xf32, #tpu.memory_space<vmem>>, %arg4: memref<4x32xbf16, #tpu.memory_space<vmem>>, %arg5: memref<48x32xbf16, #tpu.memory_space<vmem>>, %arg6: memref<4x1xf32, #tpu.memory_space<vmem>>, %arg7: memref<48x1xf32, #tpu.memory_space<vmem>>, %arg8: memref<1x32x256xf32, #tpu.memory_space<vmem>>, %arg9: memref<48x256xbf16, #tpu.memory_space<vmem>>) attributes {dimension_semantics = [#tpu.dimension_semantics<parallel>, #tpu.dimension_semantics<arbitrary>], iteration_bounds = array<i64: 2, 1>, scalar_prefetch = 0 : i64, scratch_operands = 1 : i64, tpu.core_type = #tpu.core_type<tc>, window_params = [{transform_indices = @transform_0, window_bounds = array<i64: 1>}, {pipeline_mode = #tpu.pipeline_mode<synchronous>, transform_indices = @transform_1, window_bounds = array<i64: 1, 32, 256>}, {pipeline_mode = #tpu.pipeline_mode<synchronous>, transform_indices = @transform_2, window_bounds = array<i64: 4, 32>}, {pipeline_mode = #tpu.pipeline_mode<synchronous>, transform_indices = @transform_3, window_bounds = array<i64: 48, 32>}, {pipeline_mode = #tpu.pipeline_mode<synchronous>, transform_indices = @transform_4, window_bounds = array<i64: 4, 1>}, {pipeline_mode = #tpu.pipeline_mode<synchronous>, transform_indices = @transform_5, window_bounds = array<i64: 48, 1>}, {transform_indices = @transform_6, window_bounds = array<i64: 1, 32, 256>}]} {
    %c0_i32 = arith.constant 0 : i32
    %0 = arith.cmpi eq, %arg1, %c0_i32 : i32
    %1 = arith.extui %0 : i1 to i32
    %c0_i32_0 = arith.constant 0 : i32
    %2 = arith.cmpi ne, %1, %c0_i32_0 : i32
    scf.if %2 {
      %c0_20 = arith.constant 0 : index
      %c0_21 = arith.constant 0 : index
      %c0_22 = arith.constant 0 : index
      %48 = vector.load %arg3[%c0_20, %c0_21, %c0_22] : memref<1x32x256xf32, #tpu.memory_space<vmem>>, vector<1x32x256xf32>
      %49 = vector.shape_cast %48 : vector<1x32x256xf32> to vector<32x256xf32>
      %50 = arith.truncf %49 : vector<32x256xf32> to vector<32x256xbf16>
      %c0_23 = arith.constant 0 : index
      %c0_24 = arith.constant 0 : index
      %51 = vector.load %arg5[%c0_23, %c0_24] : memref<48x32xbf16, #tpu.memory_space<vmem>>, vector<48x32xbf16>
      %cst_25 = arith.constant dense<0.000000e+00> : vector<48x256xf32>
      %52 = tpu.matmul %51, %50, %cst_25 {dimension_numbers = #tpu.dot_dimension_numbers<[1], [0], [0], [1], [0, 0, 1, 1], [], []>} : vector<48x32xbf16>, vector<32x256xbf16>, vector<48x256xf32> -> vector<48x256xf32>
      %c0_26 = arith.constant 0 : index
      %c0_27 = arith.constant 0 : index
      %53 = vector.load %arg7[%c0_26, %c0_27] : memref<48x1xf32, #tpu.memory_space<vmem>>, vector<48x1xf32>
      %54 = vector.broadcast %53 : vector<48x1xf32> to vector<48x256xf32>
      %55 = arith.addf %52, %54 : vector<48x256xf32>
      %56 = arith.truncf %55 : vector<48x256xf32> to vector<48x256xbf16>
      %c0_28 = arith.constant 0 : index
      %c0_29 = arith.constant 0 : index
      %57 = vector.load %arg9[%c0_28, %c0_29] : memref<48x256xbf16, #tpu.memory_space<vmem>>, vector<48x256xbf16>
      tpu.vector_store %arg9[%c0_28, %c0_29], %56 {strides = array<i32>} : memref<48x256xbf16, #tpu.memory_space<vmem>>, vector<48x256xbf16>,
    } else {
    }
    %c256_i32 = arith.constant 256 : i32
    %3 = arith.muli %arg1, %c256_i32 : i32
    %4 = tpu.assume_multiple %3, 256 : i32
    %c0 = arith.constant 0 : index
    %c0_1 = arith.constant 0 : index
    %5 = arith.index_cast %4 : i32 to index
    %6 = vector.load %arg3[%c0, %c0_1, %5] : memref<1x32x256xf32, #tpu.memory_space<vmem>>, vector<1x32x256xf32>
    %7 = vector.shape_cast %6 : vector<1x32x256xf32> to vector<32x256xf32>
    %c0_2 = arith.constant 0 : index
    %c0_3 = arith.constant 0 : index
    %8 = vector.load %arg4[%c0_2, %c0_3] : memref<4x32xbf16, #tpu.memory_space<vmem>>, vector<4x32xbf16>
    %9 = arith.truncf %7 : vector<32x256xf32> to vector<32x256xbf16>
    %cst = arith.constant dense<0.000000e+00> : vector<4x256xf32>
    %10 = tpu.matmul %8, %9, %cst {dimension_numbers = #tpu.dot_dimension_numbers<[1], [0], [0], [1], [0, 0, 1, 1], [], []>} : vector<4x32xbf16>, vector<32x256xbf16>, vector<4x256xf32> -> vector<4x256xf32>
    %c0_4 = arith.constant 0 : index
    %c0_5 = arith.constant 0 : index
    %11 = vector.load %arg6[%c0_4, %c0_5] : memref<4x1xf32, #tpu.memory_space<vmem>>, vector<4x1xf32>
    %12 = vector.broadcast %11 : vector<4x1xf32> to vector<4x256xf32>
    %13 = arith.addf %10, %12 : vector<4x256xf32>
    %cst_6 = arith.constant dense<0.000000e+00> : vector<256xf32>
    %14 = vector.multi_reduction <add>, %13, %cst_6 [0] : vector<4x256xf32> to vector<256xf32>
    %15 = vector.shape_cast %14 : vector<256xf32> to vector<1x256xf32>
    %cst_7 = arith.constant 4.000000e+00 : f32
    %16 = vector.broadcast %cst_7 : f32 to vector<1x256xf32>
    %17 = arith.divf %15, %16 : vector<1x256xf32>
    %18 = vector.broadcast %17 : vector<1x256xf32> to vector<4x256xf32>
    %19 = arith.subf %13, %18 : vector<4x256xf32>
    %cst_8 = arith.constant 1.250000e-01 : f32
    %20 = vector.broadcast %cst_8 : f32 to vector<4x256xf32>
    %21 = arith.mulf %19, %20 : vector<4x256xf32>
    %22 = tpu.transpose %21, [1, 0] : vector<4x256xf32> -> vector<256x4xf32>
    %23 = arith.truncf %22 : vector<256x4xf32> to vector<256x4xbf16>
    %c0_9 = arith.constant 0 : index
    %c0_10 = arith.constant 0 : index
    %24 = vector.load %arg9[%c0_9, %c0_10] : memref<48x256xbf16, #tpu.memory_space<vmem>>, vector<4x256xbf16>
    %cst_11 = arith.constant dense<0.000000e+00> : vector<256x256xf32>
    %25 = tpu.matmul %23, %24, %cst_11 {dimension_numbers = #tpu.dot_dimension_numbers<[1], [0], [0], [1], [0, 0, 1, 1], [], []>} : vector<256x4xbf16>, vector<4x256xbf16>, vector<256x256xf32> -> vector<256x256xf32>
    %cst_12 = arith.constant dense<0xFF800000> : vector<256xf32>
    %26 = vector.multi_reduction <maximumf>, %25, %cst_12 [1] : vector<256x256xf32> to vector<256xf32>
    %27 = vector.shape_cast %26 : vector<256xf32> to vector<256x1xf32>
    %28 = vector.broadcast %27 : vector<256x1xf32> to vector<256x256xf32>
    %29 = arith.subf %25, %28 : vector<256x256xf32>
    %30 = arith.truncf %29 : vector<256x256xf32> to vector<256x256xbf16>
    %31 = math.exp %30 : vector<256x256xbf16>
    %32 = arith.extf %31 : vector<256x256xbf16> to vector<256x256xf32>
    %cst_13 = arith.constant dense<0.000000e+00> : vector<256xf32>
    %33 = vector.multi_reduction <add>, %32, %cst_13 [1] : vector<256x256xf32> to vector<256xf32>
    %34 = vector.shape_cast %33 : vector<256xf32> to vector<256x1xf32>
    %35 = tpu.reciprocal %34 {approx = true} : vector<256x1xf32> -> vector<256x1xf32>
    %36 = arith.truncf %35 : vector<256x1xf32> to vector<256x1xbf16>
    %37 = vector.broadcast %36 : vector<256x1xbf16> to vector<256x256xbf16>
    %38 = arith.mulf %31, %37 : vector<256x256xbf16>
    %c16 = arith.constant 16 : index
    %c0_14 = arith.constant 0 : index
    %39 = vector.load %arg9[%c16, %c0_14] : memref<48x256xbf16, #tpu.memory_space<vmem>>, vector<32x256xbf16>
    %cst_15 = arith.constant dense<0.000000e+00> : vector<32x256xf32>
    %40 = tpu.matmul %39, %38, %cst_15 {dimension_numbers = #tpu.dot_dimension_numbers<[1], [1], [0], [0], [0, 0, 1, 0], [], []>} : vector<32x256xbf16>, vector<256x256xbf16>, vector<32x256xf32> -> vector<32x256xf32>
    %c0_16 = arith.constant 0 : index
    %41 = memref.load %arg2[%c0_16] : memref<1xf32, #tpu.memory_space<smem>>
    %42 = vector.broadcast %41 : f32 to vector<32x256xf32>
    %43 = arith.mulf %42, %40 : vector<32x256xf32>
    %44 = arith.addf %43, %7 : vector<32x256xf32>
    %c0_17 = arith.constant 0 : index
    %c0_18 = arith.constant 0 : index
    %c0_19 = arith.constant 0 : index
    %45 = vector.load %arg8[%c0_17, %c0_18, %c0_19] : memref<1x32x256xf32, #tpu.memory_space<vmem>>, vector<1x32x256xf32>
    %46 = vector.shape_cast %45 : vector<1x32x256xf32> to vector<32x256xf32>
    %47 = vector.shape_cast %44 : vector<32x256xf32> to vector<1x32x256xf32>
    tpu.vector_store %arg8[%c0_17, %c0_18, %c0_19], %47 {strides = array<i32>} : memref<1x32x256xf32, #tpu.memory_space<vmem>>, vector<1x32x256xf32>,
    return
  }
  func.func @transform_0(%arg0: i32, %arg1: i32) -> i32 {
    %c0_i32 = arith.constant 0 : i32
    %c0_i32_0 = arith.constant 0 : i32
    return %c0_i32 : i32
  }
  func.func @transform_1(%arg0: i32, %arg1: i32) -> (i32, i32, i32) {
    %c0_i32 = arith.constant 0 : i32
    %c0_i32_0 = arith.constant 0 : i32
    %c0_i32_1 = arith.constant 0 : i32
    return %arg0, %c0_i32, %c0_i32_0 : i32, i32, i32
  }
  func.func @transform_2(%arg0: i32, %arg1: i32) -> (i32, i32) {
    %c0_i32 = arith.constant 0 : i32
    %c0_i32_0 = arith.constant 0 : i32
    %c0_i32_1 = arith.constant 0 : i32
    return %c0_i32, %c0_i32_0 : i32, i32
  }
  func.func @transform_3(%arg0: i32, %arg1: i32) -> (i32, i32) {
    %c0_i32 = arith.constant 0 : i32
    %c0_i32_0 = arith.constant 0 : i32
    %c0_i32_1 = arith.constant 0 : i32
    return %c0_i32, %c0_i32_0 : i32, i32
  }
  func.func @transform_4(%arg0: i32, %arg1: i32) -> (i32, i32) {
    %c0_i32 = arith.constant 0 : i32
    %c0_i32_0 = arith.constant 0 : i32
    %c0_i32_1 = arith.constant 0 : i32
    return %c0_i32, %c0_i32_0 : i32, i32
  }
  func.func @transform_5(%arg0: i32, %arg1: i32) -> (i32, i32) {
    %c0_i32 = arith.constant 0 : i32
    %c0_i32_0 = arith.constant 0 : i32
    %c0_i32_1 = arith.constant 0 : i32
    return %c0_i32, %c0_i32_0 : i32, i32
  }
  func.func @transform_6(%arg0: i32, %arg1: i32) -> (i32, i32, i32) {
    %c0_i32 = arith.constant 0 : i32
    %c0_i32_0 = arith.constant 0 : i32
    return %arg0, %c0_i32, %arg1 : i32, i32, i32
  }
}

</mosaic_0001>

<llo_original>
// kernel: tpu_custom_call.1
$region0: #{tpu_custom_call.1}
  #allocation0 [shape = 'u32[]', space=smem, size = 0x4, offset = 0x4, fixed_abs, tag = 'smem constant byte address 0x4 - core index']
  #allocation1 [shape = 'u32[144,128]{1,0:T(1,128)}', space=vmem, size = 0x12000, scoped, tag = 'internal scratch']
  #allocation2 [shape = 'bf16[48,256]{1,0:T(8,128)(2,1)}', space=vmem, size = 0x6000, scoped, tag = 'scratch operand']
  #allocation3 [shape = 'f32[1]{0:T(128)S(6)}', space=smem, size = 0x200, scoped, tag = 'scoped memory for tpu_custom_call.1']
  %s0 = inlined_call_operand.<no memory space> [shape: f32[1], index: 0, kind: input, shape index: {}]
  %s1 = inlined_call_operand.hbm [shape: f32[2,32,256], index: 1, kind: input, shape index: {}]
  %s2 = inlined_call_operand.vmem [shape: bf16[4,32], index: 2, kind: input, shape index: {}]
  %s3 = inlined_call_operand.vmem [shape: bf16[48,32], index: 3, kind: input, shape index: {}]
  %s4 = inlined_call_operand.vmem [shape: f32[4,1], index: 4, kind: input, shape index: {}]
  %s5 = inlined_call_operand.vmem [shape: f32[48,1], index: 5, kind: input, shape index: {}]
  %s6 = inlined_call_operand.hbm [shape: f32[2,32,256], index: 6, kind: output, shape index: {}]
  %s7 = sld [smem:[#allocation0]]
  $region65: #{tpu_custom_call.1} parent=0
    _
  %s9 = ssub.s32 1, %s7
  %s10 = scalar_select 0, %s9, %s7
  %11 = sst [smem:[#allocation3]] %s0
  $region1: #{tpu_custom_call.1} parent=0
    #allocation4 [shape = 'u8[32768]{0}', space=vmem, size = 0x8000, scoped, tag = 'input window, operand 1, single buffered']
    #allocation5 [shape = 's32[2]{0}', space=sflag, size = 0x8, scoped, tag = 'scoped memory for tpu_custom_call.1']
    #allocation6 [shape = 's32[2]{0}', space=sflag, size = 0x8, scoped, tag = 'scoped memory for tpu_custom_call.1']
    #allocation7 [shape = 'u8[65536]{0}', space=vmem, size = 0x10000, scoped, tag = 'output window, operand 0']
    %12 = vsyncpa [#allocation5], 0
    %13 = vsyncpa [#allocation6], 0
    %s14 = scalar_lea.sflag [#allocation6], 1
    %15 = vsyncpa %s14, 0
    loop: start=0, step=1, limit=4
    $region2: #{tpu_custom_call.1} parent=1 // loop_pre_header
      _
    $region3: #{tpu_custom_call.1} parent=1 // loop_header
      %s17 = sphi 0, %s21
      %p18 = scmp.ge.s32.totalorder %s17, 4
      %s24 = sphi 0, %s36
      %s25 = sphi 0, %s32
      %s26 = sphi 0, %s24
      %s27 = sphi 0, %s25
      %s28 = sphi 0, %s26
      %s29 = sphi 0, %s27
      %s37 = sphi 0, %s37
      %s39 = sphi 0, %s37
      %s40 = sphi 0, %s39
      %s54 = sphi 0, %s40
      %s60 = sphi 0, %s62
      %s63 = sphi 0, %s60
      %s64 = sphi 0, %s63
      %s80 = sphi 0, %s64
      %s84 = sphi 0, %s84
      %s86 = sphi 0, %s84
      %s87 = sphi 0, %s86
      %s101 = sphi 0, %s87
      %s105 = sphi 0, %s105
      %s107 = sphi 0, %s105
      %s108 = sphi 0, %s107
      %s122 = sphi 0, %s108
      %s126 = sphi 0, %s126
      %s128 = sphi 0, %s126
      %s129 = sphi 0, %s128
      %s143 = sphi 0, %s129
      %s147 = sphi 0, %s147
      %s149 = sphi 0, %s147
      %s150 = sphi 0, %s149
      %s164 = sphi 0, %s150
      %s172 = sphi 0, %s174
      %s175 = sphi 0, %s172
      %s176 = sphi 0, %s175
      %s192 = sphi 0, %s176
    $region4: #{tpu_custom_call.1} parent=1 // loop_header_branch
      %20 = sbr.rel (%p18) target = $region8
    $region5: #{tpu_custom_call.1} parent=1 // loop_body
      %s22 = ssub.s32 %s17, 1
      %s23 = ssub.s32 %s17, 2
      %s30 = sadd.s32 1, %s25
      %p31 = scmp.ge.s32.totalorder %s30, 1
      %s32 = scalar_select %p31, 0, %s30
      %s33 = sadd.s32 1, %s24
      %s34 = scalar_select %p31, %s33, %s24
      %p35 = scmp.ge.s32.totalorder %s34, 2
      %s36 = scalar_select %p35, 0, %s34
      %s38 = sadd.s32 %s37, 1
      %p41 = scmp.eq.s32.totalorder %s17, 1
      %p42 = scmp.ne.s32.totalorder %s37, %s39
      %p43 = scmp.eq.s32.totalorder %s17, 0
      %p44 = por %p42, %p43
      %p45 = scmp.ne.s32.totalorder %s37, %s39
      %p46 = scmp.eq.s32.totalorder %s22, 1
      %p47 = por %p45, %p46
      %p48 = scmp.ne.s32.totalorder %s39, %s40
      %p49 = scmp.eq.s32.totalorder %s22, 0
      %p50 = por %p48, %p49
      %p51 = scmp.ne.s32.totalorder %s39, %s40
      %p52 = scmp.eq.s32.totalorder %s23, 1
      %p53 = por %p51, %p52
      %p55 = scmp.ne.s32.totalorder %s40, %s54
      %p56 = scmp.eq.s32.totalorder %s23, 0
      %p57 = por %p55, %p56
      %s58 = ssub.s32 %s24, %s36
      %p59 = scmp.eq.s32.totalorder %s58, 0
      %s61 = sadd.s32 %s60, 1
      %s62 = scalar_select %p59, %s60, %s61
      %p65 = pneg %p59
      %p66 = scmp.eq.s32.totalorder %s17, 1
      %p67 = por %p65, %p66
      %p68 = scmp.ne.s32.totalorder %s60, %s63
      %p69 = scmp.eq.s32.totalorder %s17, 0
      %p70 = por %p68, %p69
      %p71 = scmp.ne.s32.totalorder %s60, %s63
      %p72 = scmp.eq.s32.totalorder %s22, 1
      %p73 = por %p71, %p72
      %p74 = scmp.ne.s32.totalorder %s63, %s64
      %p75 = scmp.eq.s32.totalorder %s22, 0
      %p76 = por %p74, %p75
      %p77 = scmp.ne.s32.totalorder %s63, %s64
      %p78 = scmp.eq.s32.totalorder %s23, 1
      %p79 = por %p77, %p78
      %p81 = scmp.ne.s32.totalorder %s64, %s80
      %p82 = scmp.eq.s32.totalorder %s23, 0
      %p83 = por %p81, %p82
      %s85 = sadd.s32 %s84, 1
      %p88 = scmp.eq.s32.totalorder %s17, 1
      %p89 = scmp.ne.s32.totalorder %s84, %s86
      %p90 = scmp.eq.s32.totalorder %s17, 0
      %p91 = por %p89, %p90
      %p92 = scmp.ne.s32.totalorder %s84, %s86
      %p93 = scmp.eq.s32.totalorder %s22, 1
      %p94 = por %p92, %p93
      %p95 = scmp.ne.s32.totalorder %s86, %s87
      %p96 = scmp.eq.s32.totalorder %s22, 0
      %p97 = por %p95, %p96
      %p98 = scmp.ne.s32.totalorder %s86, %s87
      %p99 = scmp.eq.s32.totalorder %s23, 1
      %p100 = por %p98, %p99
      %p102 = scmp.ne.s32.totalorder %s87, %s101
      %p103 = scmp.eq.s32.totalorder %s23, 0
      %p104 = por %p102, %p103
      %s106 = sadd.s32 %s105, 1
      %p109 = scmp.eq.s32.totalorder %s17, 1
      %p110 = scmp.ne.s32.totalorder %s105, %s107
      %p111 = scmp.eq.s32.totalorder %s17, 0
      %p112 = por %p110, %p111
      %p113 = scmp.ne.s32.totalorder %s105, %s107
      %p114 = scmp.eq.s32.totalorder %s22, 1
      %p115 = por %p113, %p114
      %p116 = scmp.ne.s32.totalorder %s107, %s108
      %p117 = scmp.eq.s32.totalorder %s22, 0
      %p118 = por %p116, %p117
      %p119 = scmp.ne.s32.totalorder %s107, %s108
      %p120 = scmp.eq.s32.totalorder %s23, 1
      %p121 = por %p119, %p120
      %p123 = scmp.ne.s32.totalorder %s108, %s122
      %p124 = scmp.eq.s32.totalorder %s23, 0
      %p125 = por %p123, %p124
      %s127 = sadd.s32 %s126, 1
      %p130 = scmp.eq.s32.totalorder %s17, 1
      %p131 = scmp.ne.s32.totalorder %s126, %s128
      %p132 = scmp.eq.s32.totalorder %s17, 0
      %p133 = por %p131, %p132
      %p134 = scmp.ne.s32.totalorder %s126, %s128
      %p135 = scmp.eq.s32.totalorder %s22, 1
      %p136 = por %p134, %p135
      %p137 = scmp.ne.s32.totalorder %s128, %s129
      %p138 = scmp.eq.s32.totalorder %s22, 0
      %p139 = por %p137, %p138
      %p140 = scmp.ne.s32.totalorder %s128, %s129
      %p141 = scmp.eq.s32.totalorder %s23, 1
      %p142 = por %p140, %p141
      %p144 = scmp.ne.s32.totalorder %s129, %s143
      %p145 = scmp.eq.s32.totalorder %s23, 0
      %p146 = por %p144, %p145
      %s148 = sadd.s32 %s147, 1
      %p151 = scmp.eq.s32.totalorder %s17, 1
      %p152 = scmp.ne.s32.totalorder %s147, %s149
      %p153 = scmp.eq.s32.totalorder %s17, 0
      %p154 = por %p152, %p153
      %p155 = scmp.ne.s32.totalorder %s147, %s149
      %p156 = scmp.eq.s32.totalorder %s22, 1
      %p157 = por %p155, %p156
      %p158 = scmp.ne.s32.totalorder %s149, %s150
      %p159 = scmp.eq.s32.totalorder %s22, 0
      %p160 = por %p158, %p159
      %p161 = scmp.ne.s32.totalorder %s149, %s150
      %p162 = scmp.eq.s32.totalorder %s23, 1
      %p163 = por %p161, %p162
      %p165 = scmp.ne.s32.totalorder %s150, %s164
      %p166 = scmp.eq.s32.totalorder %s23, 0
      %p167 = por %p165, %p166
      %s168 = ssub.s32 %s24, %s36
      %s169 = ssub.s32 %s25, %s32
      %s170 = sor.u32 %s168, %s169
      %p171 = scmp.eq.s32.totalorder %s170, 0
      %s173 = sadd.s32 %s172, 1
      %s174 = scalar_select %p171, %s172, %s173
      %p177 = pneg %p171
      %p178 = scmp.eq.s32.totalorder %s17, 1
      %p179 = por %p177, %p178
      %p180 = scmp.ne.s32.totalorder %s172, %s175
      %p181 = scmp.eq.s32.totalorder %s17, 0
      %p182 = por %p180, %p181
      %p183 = scmp.ne.s32.totalorder %s172, %s175
      %p184 = scmp.eq.s32.totalorder %s22, 1
      %p185 = por %p183, %p184
      %p186 = scmp.ne.s32.totalorder %s175, %s176
      %p187 = scmp.eq.s32.totalorder %s22, 0
      %p188 = por %p186, %p187
      %p189 = scmp.ne.s32.totalorder %s175, %s176
      %p190 = scmp.eq.s32.totalorder %s23, 1
      %p191 = por %p189, %p190
      %p193 = scmp.ne.s32.totalorder %s176, %s192
      %p194 = scmp.eq.s32.totalorder %s23, 0
      %p195 = por %p193, %p194
      %p196 = scmp.le.s32.totalorder 1, %s17
      %p197 = scmp.lt.s32.totalorder %s17, 3
      %p198 = pnand %p196, %p197
      %p199 = pneg %p198
      // Predicated region
      $region9: #{tpu_custom_call.1} parent=5 // pred_check
        _
      $region10: #{tpu_custom_call.1} parent=5 // pred_check_branch
        %201 = sbr.rel (%p198) target = $region12
      $region11: #{tpu_custom_call.1} parent=5 // pred_region
        %s202 = ssub.s32 %s17, 1
        // Predicated region
        $region13: #{tpu_custom_call.1} parent=11 // pred_check
          %p203 = pneg %p50
        $region14: #{tpu_custom_call.1} parent=11 // pred_check_branch
          %205 = sbr.rel (%p203) target = $region16
        $region15: #{tpu_custom_call.1} parent=11 // pred_region
          _
        $region16: #{tpu_custom_call.1} parent=11 // pred_fallthru
          _
        // Predicated region
        $region17: #{tpu_custom_call.1} parent=11 // pred_check
          %p206 = pneg %p76
        $region18: #{tpu_custom_call.1} parent=11 // pred_check_branch
          %208 = sbr.rel (%p206) target = $region20
        $region19: #{tpu_custom_call.1} parent=11 // pred_region
          %s210 = ssub.s32 1024, 1024
          %211 = vsyncadd [#allocation5], %s210
          %s212 = smul.addr %s26, 8
          %s213 = smul.addr %s212, 128
          %s214 = scalar_lea.hbm %s1, %s213
          %s215 = sshll.u32 [#allocation4], 4
          %s216 = int_to_ptr.vmem [resolvable:$true] %s215
          %221 = dma.hbm_to_vmem [thread:$0]  %s214, 1024, %s216, [#allocation5], 256, 256, 16
        $region20: #{tpu_custom_call.1} parent=11 // pred_fallthru
          _
        // Predicated region
        $region21: #{tpu_custom_call.1} parent=11 // pred_check
          %p222 = pneg %p97
        $region22: #{tpu_custom_call.1} parent=11 // pred_check_branch
          %224 = sbr.rel (%p222) target = $region24
        $region23: #{tpu_custom_call.1} parent=11 // pred_region
          _
        $region24: #{tpu_custom_call.1} parent=11 // pred_fallthru
          _
        // Predicated region
        $region25: #{tpu_custom_call.1} parent=11 // pred_check
          %p225 = pneg %p118
        $region26: #{tpu_custom_call.1} parent=11 // pred_check_branch
          %227 = sbr.rel (%p225) target = $region28
        $region27: #{tpu_custom_call.1} parent=11 // pred_region
          _
        $region28: #{tpu_custom_call.1} parent=11 // pred_fallthru
          _
        // Predicated region
        $region29: #{tpu_custom_call.1} parent=11 // pred_check
          %p228 = pneg %p139
        $region30: #{tpu_custom_call.1} parent=11 // pred_check_branch
          %230 = sbr.rel (%p228) target = $region32
        $region31: #{tpu_custom_call.1} parent=11 // pred_region
          _
        $region32: #{tpu_custom_call.1} parent=11 // pred_fallthru
          _
        // Predicated region
        $region33: #{tpu_custom_call.1} parent=11 // pred_check
          %p231 = pneg %p160
        $region34: #{tpu_custom_call.1} parent=11 // pred_check_branch
          %233 = sbr.rel (%p231) target = $region36
        $region35: #{tpu_custom_call.1} parent=11 // pred_region
          _
        $region36: #{tpu_custom_call.1} parent=11 // pred_fallthru
          _
      $region12: #{tpu_custom_call.1} parent=5 // pred_fallthru
        _
      %p234 = scmp.lt.s32.totalorder %s17, 2
      // Predicated region
      $region37: #{tpu_custom_call.1} parent=5 // pred_check
        %p235 = pneg %p234
      $region38: #{tpu_custom_call.1} parent=5 // pred_check_branch
        %237 = sbr.rel (%p235) target = $region40
      $region39: #{tpu_custom_call.1} parent=5 // pred_region
        _
      $region40: #{tpu_custom_call.1} parent=5 // pred_fallthru
        _
      %p238 = scmp.le.s32.totalorder 1, %s17
      %p239 = scmp.lt.s32.totalorder %s17, 3
      %p240 = pnand %p238, %p239
      %p241 = pneg %p240
      // Predicated region
      $region41: #{tpu_custom_call.1} parent=5 // pred_check
        _
      $region42: #{tpu_custom_call.1} parent=5 // pred_check_branch
        %243 = sbr.rel (%p240) target = $region44
      $region43: #{tpu_custom_call.1} parent=5 // pred_region
        %s244 = ssub.s32 %s17, 1
        // Predicated region
        $region45: #{tpu_custom_call.1} parent=43 // pred_check
          %p245 = pneg %p76
        $region46: #{tpu_custom_call.1} parent=43 // pred_check_branch
          %247 = sbr.rel (%p245) target = $region48
        $region47: #{tpu_custom_call.1} parent=43 // pred_region
          %248 = dma.done [#allocation5], 1024
        $region48: #{tpu_custom_call.1} parent=43 // pred_fallthru
          _
        %p249 = pneg %p50
        %p250 = pneg %p47
        %p251 = pneg %p76
        %p252 = pneg %p73
        %p253 = pneg %p97
        %p254 = pneg %p94
        %p255 = pneg %p118
        %p256 = pneg %p115
        %p257 = pneg %p139
        %p258 = pneg %p136
        %p259 = pneg %p160
        %p260 = pneg %p157
        %p261 = pneg %p188
        %p262 = pneg %p185
        %s263 = sand.u32 %s175, 1
        %s264 = scalar_lea.sflag [#allocation6], %s263
        %s265 = sand.u32 %s175, 1
        %s266 = smul.addr %s265, 64
        %s267 = scalar_lea.vmem [#allocation7], %s266
        %s268 = smul.u32 2, %s27
        %p270 = scmp.eq.s32.totalorder %s27, 0
        // Predicated region
        $region49: #{tpu_custom_call.1} parent=43 // pred_check
          %p271 = pneg %p270
        $region50: #{tpu_custom_call.1} parent=43 // pred_check_branch
          %273 = sbr.rel (%p271) target = $region52
        $region51: #{tpu_custom_call.1} parent=43 // pred_region
          %v274 = vld [vmem:[#allocation4] sm:$0xff]
          %v275 = vld [vmem:[#allocation4 + $0x8] sm:$0xff]
          %v276 = vld [vmem:[#allocation4 + $0x10] sm:$0xff]
          %v277 = vld [vmem:[#allocation4 + $0x18] sm:$0xff]
          %v278 = vld [vmem:[#allocation4 + $0x20] sm:$0xff]
          %v279 = vld [vmem:[#allocation4 + $0x28] sm:$0xff]
          %v280 = vld [vmem:[#allocation4 + $0x30] sm:$0xff]
          %v281 = vld [vmem:[#allocation4 + $0x38] sm:$0xff]
          %v282 = vpack.c.bf16 %v276, %v274
          %v283 = vpack.c.bf16 %v277, %v275
          %v284 = vpack.c.bf16 %v280, %v278
          %v285 = vpack.c.bf16 %v281, %v279
          %v286 = vld [vmem:[%s3] sm:$0xf]
          %v287 = vld [vmem:[%s3 + $0x4] sm:$0xf]
          %v288 = vld [vmem:[%s3 + $0x8] sm:$0xf]
          %v289 = vld [vmem:[%s3 + $0xc] sm:$0xf]
          %v290 = vld [vmem:[%s3 + $0x10] sm:$0xf]
          %v291 = vld [vmem:[%s3 + $0x14] sm:$0xf]
          %v292 = vld [vmem:[%s5] sm:$0xff]
          %v293 = vld [vmem:[%s5 + $0x8] sm:$0xff]
          %v294 = vld [vmem:[%s5 + $0x10] sm:$0xff]
          %v295 = vld [vmem:[%s5 + $0x18] sm:$0xff]
          %v296 = vld [vmem:[%s5 + $0x20] sm:$0xff]
          %v297 = vld [vmem:[%s5 + $0x28] sm:$0xff]
          %299 = vset.pattern.permute.xlu0 0
          %300 = vperm.xlu0 %299, %v292
          %v301 = vpop.permute.xlu0 %300
          %304 = vset.pattern.permute.xlu0 0
          %305 = vperm.xlu0 %304, %v293
          %v306 = vpop.permute.xlu0 %305
          %309 = vset.pattern.permute.xlu0 0
          %310 = vperm.xlu0 %309, %v294
          %v311 = vpop.permute.xlu0 %310
          %314 = vset.pattern.permute.xlu0 0
          %315 = vperm.xlu0 %314, %v295
          %v316 = vpop.permute.xlu0 %315
          %319 = vset.pattern.permute.xlu0 0
          %320 = vperm.xlu0 %319, %v296
          %v321 = vpop.permute.xlu0 %320
          %324 = vset.pattern.permute.xlu0 0
          %325 = vperm.xlu0 %324, %v297
          %v326 = vpop.permute.xlu0 %325
          %v334 = vunpack.c.l.b16 %v286
          %v335 = vunpack.c.l.b16 %v287
          %v336 = vunpack.c.l.b16 %v288
          %v337 = vunpack.c.l.b16 %v289
          %v338 = vunpack.c.l.b16 %v290
          %v339 = vunpack.c.l.b16 %v291
          %v340 = vpack.c.b16 %v335, %v334
          %v341 = vpack.c.b16 %v337, %v336
          %v342 = vpack.c.b16 %v339, %v338
          %vm343 = vcmask 261120
          %v345 = vsel %vm343, %v340, 0
          %v348 = vsel %vm343, %v341, 0
          %v351 = vsel %vm343, %v342, 0
          %353 = vmatprep.subr.bf16.mxu0 0
          %354 = vmatpush1.bf16.msra.mxu0 0
          %355 = vmatprep.subr.bf16.mxu0 0
          %356 = vmatpush1.bf16.msra.mxu0 0
          %357 = vmatprep.subr.bf16.mxu0 0
          %358 = vmatpush1.bf16.msra.mxu0 0
          %359 = vmatprep.subr.bf16.mxu0 0
          %360 = vmatpush1.bf16.msra.mxu0 0
          %361 = vmatprep.subr.bf16.mxu0 0
          %362 = vmatpush1.bf16.msra.mxu0 0
          %363 = vmatprep.subr.bf16.mxu0 0
          %364 = vmatpush1.bf16.msra.mxu0 0
          %365 = vmatprep.subr.bf16.mxu0 %v285
          %366 = vmatpush1.bf16.msra.mxu0 %v284
          %367 = vmatprep.subr.bf16.mxu0 %v283
          %368 = vmatpush1.bf16.msra.mxu0 %v282
          %369 = vmatprep.subr.bf16.mxu0 0
          %370 = vmatpush2.bf16.msra.mxu0 0
          %371 = vmatprep.subr.bf16.mxu0 0
          %372 = vmatpush2.bf16.msra.mxu0 0
          %373 = vmatprep.subr.bf16.mxu0 0
          %374 = vmatpush2.bf16.msra.mxu0 0
          %375 = vmatprep.subr.bf16.mxu0 0
          %376 = vmatpush2.bf16.msra.mxu0 0
          %377 = vmatprep.subr.bf16.mxu0 0
          %378 = vmatpush2.bf16.msra.mxu0 0
          %379 = vmatprep.subr.bf16.mxu0 0
          %380 = vmatpush2.bf16.msra.mxu0 0
          %381 = vmatprep.subr.bf16.mxu0 0
          %382 = vmatpush2.bf16.msra.mxu0 0
          %383 = vmatprep.subr.bf16.mxu0 0
          %384 = vmatpush2.bf16.msra.mxu0 0
          %385 = vmatprep.mubr.bf16.mxu0 0
          %386 = vmatmul.mubr.bf16.gmra.mxu0 %v345
          %v387 = vpop.f32.mrf.mxu0
          %v388 = vadd.f32 %v301, %v387
          %v389 = vpop.f32.mrf.mxu0
          %v390 = vadd.f32 %v301, %v389
          %v391 = vpop.f32.mrf.mxu0
          %v392 = vadd.f32 %v306, %v391
          %v393 = vpop.f32.mrf.mxu0
          %v394 = vadd.f32 %v306, %v393
          %395 = vmatprep.mubr.bf16.mxu0 0
          %396 = vmatmul.mubr.bf16.gmra.mxu0 %v348
          %v397 = vpop.f32.mrf.mxu0
          %v398 = vadd.f32 %v311, %v397
          %v399 = vpop.f32.mrf.mxu0
          %v400 = vadd.f32 %v311, %v399
          %v401 = vpop.f32.mrf.mxu0
          %v402 = vadd.f32 %v316, %v401
          %v403 = vpop.f32.mrf.mxu0
          %v404 = vadd.f32 %v316, %v403
          %405 = vmatprep.mubr.bf16.mxu0 0
          %406 = vmatmul.mubr.bf16.gmra.mxu0 %v351
          %v407 = vpop.f32.mrf.mxu0
          %v408 = vadd.f32 %v321, %v407
          %v409 = vpop.f32.mrf.mxu0
          %v410 = vadd.f32 %v321, %v409
          %v411 = vpop.f32.mrf.mxu0
          %v412 = vadd.f32 %v326, %v411
          %v413 = vpop.f32.mrf.mxu0
          %v414 = vadd.f32 %v326, %v413
          %415 = vdwg.mxu0
          %v416 = vpack.c.bf16 %v392, %v388
          %v417 = vpack.c.bf16 %v394, %v390
          %v418 = vpack.c.bf16 %v402, %v398
          %v419 = vpack.c.bf16 %v404, %v400
          %v420 = vpack.c.bf16 %v412, %v408
          %v421 = vpack.c.bf16 %v414, %v410
          %v428 = vunpack.c.l.b16 %v416
          %v429 = vunpack.c.l.b16 %v417
          %v430 = vunpack.c.h.b16 %v416
          %v431 = vunpack.c.h.b16 %v417
          %v432 = vunpack.c.l.b16 %v418
          %v433 = vunpack.c.l.b16 %v419
          %v434 = vunpack.c.h.b16 %v418
          %v435 = vunpack.c.h.b16 %v419
          %v436 = vunpack.c.l.b16 %v420
          %v437 = vunpack.c.l.b16 %v421
          %v438 = vunpack.c.h.b16 %v420
          %v439 = vunpack.c.h.b16 %v421
          %v440 = vpack.c.b16 %v429, %v428
          %v441 = vpack.c.b16 %v431, %v430
          %v442 = vpack.c.b16 %v433, %v432
          %v443 = vpack.c.b16 %v435, %v434
          %v444 = vpack.c.b16 %v437, %v436
          %v445 = vpack.c.b16 %v439, %v438
          %452 = vst [vmem:[#allocation2] sm:$0xff] %v440
          %453 = vst [vmem:[#allocation2 + $0x8] sm:$0xff] %v441
          %454 = vst [vmem:[#allocation2 + $0x10] sm:$0xff] %v442
          %455 = vst [vmem:[#allocation2 + $0x18] sm:$0xff] %v443
          %456 = vst [vmem:[#allocation2 + $0x20] sm:$0xff] %v444
          %457 = vst [vmem:[#allocation2 + $0x28] sm:$0xff] %v445
        $region52: #{tpu_custom_call.1} parent=43 // pred_fallthru
          _
        %s458 = smul.u32 %s27, 256
        %s459 = sshra.s32 %s458, 7
        %s460 = sand.u32 %s458, 127
        %s461 = smul.addr %s459, 8
        %s462 = scalar_lea.vmem [#allocation4], %s461
        %v463 = vld [vmem:[%s462] sm:$0xff]
        %v464 = vld [vmem:[%s462 + $0x8] sm:$0xff]
        %v465 = vld [vmem:[%s462 + $0x10] sm:$0xff]
        %v466 = vld [vmem:[%s462 + $0x18] sm:$0xff]
        %v467 = vld [vmem:[%s462 + $0x20] sm:$0xff]
        %v468 = vld [vmem:[%s462 + $0x28] sm:$0xff]
        %v469 = vld [vmem:[%s462 + $0x30] sm:$0xff]
        %v470 = vld [vmem:[%s462 + $0x38] sm:$0xff]
        %v471 = vld [vmem:[%s2] sm:$0x3]
        %v472 = vpack.c.bf16 %v465, %v463
        %v473 = vpack.c.bf16 %v466, %v464
        %v474 = vpack.c.bf16 %v469, %v467
        %v475 = vpack.c.bf16 %v470, %v468
        %v476 = vld [vmem:[%s4] sm:$0xf]
        %478 = vset.pattern.permute.xlu0 0
        %479 = vperm.xlu0 %478, %v476
        %v480 = vpop.permute.xlu0 %479
        %vm482 = vcmask 261120
        %v484 = vsel %vm482, %v471, 0
        %486 = vmatprep.subr.bf16.mxu0 0
        %487 = vmatpush1.bf16.msra.mxu0 0
        %488 = vmatprep.subr.bf16.mxu0 0
        %489 = vmatpush1.bf16.msra.mxu0 0
        %490 = vmatprep.subr.bf16.mxu0 0
        %491 = vmatpush1.bf16.msra.mxu0 0
        %492 = vmatprep.subr.bf16.mxu0 0
        %493 = vmatpush1.bf16.msra.mxu0 0
        %494 = vmatprep.subr.bf16.mxu0 0
        %495 = vmatpush1.bf16.msra.mxu0 0
        %496 = vmatprep.subr.bf16.mxu0 0
        %497 = vmatpush1.bf16.msra.mxu0 0
        %498 = vmatprep.subr.bf16.mxu0 %v475
        %499 = vmatpush1.bf16.msra.mxu0 %v474
        %500 = vmatprep.subr.bf16.mxu0 %v473
        %501 = vmatpush1.bf16.msra.mxu0 %v472
        %502 = vmatprep.subr.bf16.mxu0 0
        %503 = vmatpush2.bf16.msra.mxu0 0
        %504 = vmatprep.subr.bf16.mxu0 0
        %505 = vmatpush2.bf16.msra.mxu0 0
        %506 = vmatprep.subr.bf16.mxu0 0
        %507 = vmatpush2.bf16.msra.mxu0 0
        %508 = vmatprep.subr.bf16.mxu0 0
        %509 = vmatpush2.bf16.msra.mxu0 0
        %510 = vmatprep.subr.bf16.mxu0 0
        %511 = vmatpush2.bf16.msra.mxu0 0
        %512 = vmatprep.subr.bf16.mxu0 0
        %513 = vmatpush2.bf16.msra.mxu0 0
        %514 = vmatprep.subr.bf16.mxu0 0
        %515 = vmatpush2.bf16.msra.mxu0 0
        %516 = vmatprep.subr.bf16.mxu0 0
        %517 = vmatpush2.bf16.msra.mxu0 0
        %518 = vmatprep.mubr.bf16.mxu0 0
        %519 = vmatmul.mubr.bf16.gmra.mxu0 %v484
        %v520 = vpop.f32.mrf.mxu0
        %v521 = vadd.f32 %v480, %v520
        %v522 = vpop.f32.mrf.mxu0
        %v523 = vadd.f32 %v480, %v522
        %v524 = vpop.f32.mrf.mxu0
        %v525 = vpop.f32.mrf.mxu0
        %526 = vdwg.mxu0
        %vm527 = vcmask 1043456
        %v528 = vsel %vm527, %v521, 0.0
        %v529 = vrot.slane %v528, 4
        %v530 = vadd.f32 %v528, %v529
        %v531 = vrot.slane %v530, 2
        %v532 = vadd.f32 %v530, %v531
        %v533 = vrot.slane %v532, 1
        %v534 = vadd.f32 %v532, %v533
        %v535 = vsel %vm527, %v523, 0.0
        %v536 = vrot.slane %v535, 4
        %v537 = vadd.f32 %v535, %v536
        %v538 = vrot.slane %v537, 2
        %v539 = vadd.f32 %v537, %v538
        %v540 = vrot.slane %v539, 1
        %v541 = vadd.f32 %v539, %v540
        %v542 = vrcp.pop 4.0
        %v543 = vmul.f32 %v534, %v542
        %v544 = vmul.f32 %v541, %v542
        %v545 = vsub.f32 %v521, %v543
        %v546 = vsub.f32 %v523, %v544
        %v547 = vmul.f32 %v545, 0.125
        %v548 = vmul.f32 %v546, 0.125
        %549 = vxpose.xlu0.b32.start [1/16] %v547, 128
        %550 = vxpose.xlu0.b32.cont [2/16] 0.0, 128
        %551 = vxpose.xlu0.b32.cont [3/16] 0.0, 128
        %552 = vxpose.xlu0.b32.cont [4/16] 0.0, 128
        %553 = vxpose.xlu0.b32.cont [5/16] 0.0, 128
        %554 = vxpose.xlu0.b32.cont [6/16] 0.0, 128
        %555 = vxpose.xlu0.b32.cont [7/16] 0.0, 128
        %556 = vxpose.xlu0.b32.cont [8/16] 0.0, 128
        %557 = vxpose.xlu0.b32.cont [9/16] 0.0, 128
        %558 = vxpose.xlu0.b32.cont [10/16] 0.0, 128
        %559 = vxpose.xlu0.b32.cont [11/16] 0.0, 128
        %560 = vxpose.xlu0.b32.cont [12/16] 0.0, 128
        %561 = vxpose.xlu0.b32.cont [13/16] 0.0, 128
        %562 = vxpose.xlu0.b32.cont [14/16] 0.0, 128
        %563 = vxpose.xlu0.b32.cont [15/16] 0.0, 128
        %564 = vxpose.xlu0.b32.end [16/16] 0.0, 128
        %v565 = vpop.trf.xlu0
        %v566 = vpop.trf.xlu0
        %v567 = vpop.trf.xlu0
        %v568 = vpop.trf.xlu0
        %v569 = vpop.trf.xlu0
        %v570 = vpop.trf.xlu0
        %v571 = vpop.trf.xlu0
        %v572 = vpop.trf.xlu0
        %v573 = vpop.trf.xlu0
        %v574 = vpop.trf.xlu0
        %v575 = vpop.trf.xlu0
        %v576 = vpop.trf.xlu0
        %v577 = vpop.trf.xlu0
        %v578 = vpop.trf.xlu0
        %v579 = vpop.trf.xlu0
        %v580 = vpop.trf.xlu0
        %581 = vxpose.xlu0.b32.start [1/16] %v548, 128
        %582 = vxpose.xlu0.b32.cont [2/16] 0.0, 128
        %583 = vxpose.xlu0.b32.cont [3/16] 0.0, 128
        %584 = vxpose.xlu0.b32.cont [4/16] 0.0, 128
        %585 = vxpose.xlu0.b32.cont [5/16] 0.0, 128
        %586 = vxpose.xlu0.b32.cont [6/16] 0.0, 128
        %587 = vxpose.xlu0.b32.cont [7/16] 0.0, 128
        %588 = vxpose.xlu0.b32.cont [8/16] 0.0, 128
        %589 = vxpose.xlu0.b32.cont [9/16] 0.0, 128
        %590 = vxpose.xlu0.b32.cont [10/16] 0.0, 128
        %591 = vxpose.xlu0.b32.cont [11/16] 0.0, 128
        %592 = vxpose.xlu0.b32.cont [12/16] 0.0, 128
        %593 = vxpose.xlu0.b32.cont [13/16] 0.0, 128
        %594 = vxpose.xlu0.b32.cont [14/16] 0.0, 128
        %595 = vxpose.xlu0.b32.cont [15/16] 0.0, 128
        %596 = vxpose.xlu0.b32.end [16/16] 0.0, 128
        %v597 = vpop.trf.xlu0
        %v598 = vpop.trf.xlu0
        %v599 = vpop.trf.xlu0
        %v600 = vpop.trf.xlu0
        %v601 = vpop.trf.xlu0
        %v602 = vpop.trf.xlu0
        %v603 = vpop.trf.xlu0
        %v604 = vpop.trf.xlu0
        %v605 = vpop.trf.xlu0
        %v606 = vpop.trf.xlu0
        %v607 = vpop.trf.xlu0
        %v608 = vpop.trf.xlu0
        %v609 = vpop.trf.xlu0
        %v610 = vpop.trf.xlu0
        %v611 = vpop.trf.xlu0
        %v612 = vpop.trf.xlu0
        %v613 = vpack.c.bf16 %v566, %v565
        %v614 = vpack.c.bf16 %v568, %v567
        %v615 = vpack.c.bf16 %v570, %v569
        %v616 = vpack.c.bf16 %v572, %v571
        %v617 = vpack.c.bf16 %v574, %v573
        %v618 = vpack.c.bf16 %v576, %v575
        %v619 = vpack.c.bf16 %v578, %v577
        %v620 = vpack.c.bf16 %v580, %v579
        %v621 = vpack.c.bf16 %v598, %v597
        %v622 = vpack.c.bf16 %v600, %v599
        %v623 = vpack.c.bf16 %v602, %v601
        %v624 = vpack.c.bf16 %v604, %v603
        %v625 = vpack.c.bf16 %v606, %v605
        %v626 = vpack.c.bf16 %v608, %v607
        %v627 = vpack.c.bf16 %v610, %v609
        %v628 = vpack.c.bf16 %v612, %v611
        %v629 = vld [vmem:[#allocation2] sm:$0x33]
        %v631 = vunpack.c.l.b16 %v629
        %v632 = vunpack.c.h.b16 %v629
        %v633 = vpack.c.b16 %v631, %v631
        %v634 = vpack.c.b16 %v632, %v632
        %vm635 = vcmask 31744
        %v637 = vsel %vm635, %v613, 0
        %v640 = vsel %vm635, %v614, 0
        %v643 = vsel %vm635, %v615, 0
        %v646 = vsel %vm635, %v616, 0
        %v649 = vsel %vm635, %v617, 0
        %v652 = vsel %vm635, %v618, 0
        %v655 = vsel %vm635, %v619, 0
        %v658 = vsel %vm635, %v620, 0
        %v661 = vsel %vm635, %v621, 0
        %v664 = vsel %vm635, %v622, 0
        %v667 = vsel %vm635, %v623, 0
        %v670 = vsel %vm635, %v624, 0
        %v673 = vsel %vm635, %v625, 0
        %v676 = vsel %vm635, %v626, 0
        %v679 = vsel %vm635, %v627, 0
        %v682 = vsel %vm635, %v628, 0
        %vm684 = vcmask 1041408
        %v686 = vsel %vm684, %v633, 0
        %v689 = vsel %vm684, %v634, 0
        %691 = vmatprep.subr.bf16.mxu0 0
        %692 = vmatpush1.bf16.msra.mxu0 0
        %693 = vmatprep.subr.bf16.mxu0 0
        %694 = vmatpush1.bf16.msra.mxu0 0
        %695 = vmatprep.subr.bf16.mxu0 0
        %696 = vmatpush1.bf16.msra.mxu0 0
        %697 = vmatprep.subr.bf16.mxu0 0
        %698 = vmatpush1.bf16.msra.mxu0 0
        %699 = vmatprep.subr.bf16.mxu0 0
        %700 = vmatpush1.bf16.msra.mxu0 0
        %701 = vmatprep.subr.bf16.mxu0 0
        %702 = vmatpush1.bf16.msra.mxu0 0
        %703 = vmatprep.subr.bf16.mxu0 0
        %704 = vmatpush1.bf16.msra.mxu0 0
        %705 = vmatprep.subr.bf16.mxu0 %v689
        %706 = vmatpush1.bf16.msra.mxu0 %v686
        %707 = vmatprep.subr.bf16.mxu0 0
        %708 = vmatpush2.bf16.msra.mxu0 0
        %709 = vmatprep.subr.bf16.mxu0 0
        %710 = vmatpush2.bf16.msra.mxu0 0
        %711 = vmatprep.subr.bf16.mxu0 0
        %712 = vmatpush2.bf16.msra.mxu0 0
        %713 = vmatprep.subr.bf16.mxu0 0
        %714 = vmatpush2.bf16.msra.mxu0 0
        %715 = vmatprep.subr.bf16.mxu0 0
        %716 = vmatpush2.bf16.msra.mxu0 0
        %717 = vmatprep.subr.bf16.mxu0 0
        %718 = vmatpush2.bf16.msra.mxu0 0
        %719 = vmatprep.subr.bf16.mxu0 0
        %720 = vmatpush2.bf16.msra.mxu0 0
        %721 = vmatprep.subr.bf16.mxu0 0
        %722 = vmatpush2.bf16.msra.mxu0 0
        %723 = vmatprep.mubr.bf16.mxu0 0
        %724 = vmatmul.mubr.bf16.gmra.mxu0 %v637
        %v725 = vpop.f32.mrf.mxu0
        %v726 = vadd.f32 0.0, %v725
        %v727 = vpop.f32.mrf.mxu0
        %v728 = vadd.f32 0.0, %v727
        %v729 = vpop.f32.mrf.mxu0
        %v730 = vadd.f32 0.0, %v729
        %v731 = vpop.f32.mrf.mxu0
        %v732 = vadd.f32 0.0, %v731
        %733 = vmatprep.mubr.bf16.mxu0 0
        %734 = vmatmul.mubr.bf16.gmra.mxu0 %v640
        %v735 = vpop.f32.mrf.mxu0
        %v736 = vadd.f32 0.0, %v735
        %v737 = vpop.f32.mrf.mxu0
        %v738 = vadd.f32 0.0, %v737
        %v739 = vpop.f32.mrf.mxu0
        %v740 = vadd.f32 0.0, %v739
        %v741 = vpop.f32.mrf.mxu0
        %v742 = vadd.f32 0.0, %v741
        %743 = vmatprep.mubr.bf16.mxu0 0
        %744 = vmatmul.mubr.bf16.gmra.mxu0 %v643
        %v745 = vpop.f32.mrf.mxu0
        %v746 = vadd.f32 0.0, %v745
        %v747 = vpop.f32.mrf.mxu0
        %v748 = vadd.f32 0.0, %v747
        %v749 = vpop.f32.mrf.mxu0
        %v750 = vadd.f32 0.0, %v749
        %v751 = vpop.f32.mrf.mxu0
        %v752 = vadd.f32 0.0, %v751
        %753 = vmatprep.mubr.bf16.mxu0 0
        %754 = vmatmul.mubr.bf16.gmra.mxu0 %v646
        %v755 = vpop.f32.mrf.mxu0
        %v756 = vadd.f32 0.0, %v755
        %v757 = vpop.f32.mrf.mxu0
        %v758 = vadd.f32 0.0, %v757
        %v759 = vpop.f32.mrf.mxu0
        %v760 = vadd.f32 0.0, %v759
        %v761 = vpop.f32.mrf.mxu0
        %v762 = vadd.f32 0.0, %v761
        %763 = vmatprep.mubr.bf16.mxu0 0
        %764 = vmatmul.mubr.bf16.gmra.mxu0 %v649
        %v765 = vpop.f32.mrf.mxu0
        %v766 = vadd.f32 0.0, %v765
        %v767 = vpop.f32.mrf.mxu0
        %v768 = vadd.f32 0.0, %v767
        %v769 = vpop.f32.mrf.mxu0
        %v770 = vadd.f32 0.0, %v769
        %v771 = vpop.f32.mrf.mxu0
        %v772 = vadd.f32 0.0, %v771
        %773 = vmatprep.mubr.bf16.mxu0 0
        %774 = vmatmul.mubr.bf16.gmra.mxu0 %v652
        %v775 = vpop.f32.mrf.mxu0
        %v776 = vadd.f32 0.0, %v775
        %v777 = vpop.f32.mrf.mxu0
        %v778 = vadd.f32 0.0, %v777
        %v779 = vpop.f32.mrf.mxu0
        %v780 = vadd.f32 0.0, %v779
        %v781 = vpop.f32.mrf.mxu0
        %v782 = vadd.f32 0.0, %v781
        %783 = vmatprep.mubr.bf16.mxu0 0
        %784 = vmatmul.mubr.bf16.gmra.mxu0 %v655
        %v785 = vpop.f32.mrf.mxu0
        %v786 = vadd.f32 0.0, %v785
        %v787 = vpop.f32.mrf.mxu0
        %v788 = vadd.f32 0.0, %v787
        %v789 = vpop.f32.mrf.mxu0
        %v790 = vadd.f32 0.0, %v789
        %v791 = vpop.f32.mrf.mxu0
        %v792 = vadd.f32 0.0, %v791
        %793 = vmatprep.mubr.bf16.mxu0 0
        %794 = vmatmul.mubr.bf16.gmra.mxu0 %v658
        %v795 = vpop.f32.mrf.mxu0
        %v796 = vadd.f32 0.0, %v795
        %v797 = vpop.f32.mrf.mxu0
        %v798 = vadd.f32 0.0, %v797
        %v799 = vpop.f32.mrf.mxu0
        %v800 = vadd.f32 0.0, %v799
        %v801 = vpop.f32.mrf.mxu0
        %v802 = vadd.f32 0.0, %v801
        %803 = vmatprep.mubr.bf16.mxu0 0
        %804 = vmatmul.mubr.bf16.gmra.mxu0 %v661
        %v805 = vpop.f32.mrf.mxu0
        %v806 = vadd.f32 0.0, %v805
        %v807 = vpop.f32.mrf.mxu0
        %v808 = vadd.f32 0.0, %v807
        %v809 = vpop.f32.mrf.mxu0
        %v810 = vadd.f32 0.0, %v809
        %v811 = vpop.f32.mrf.mxu0
        %v812 = vadd.f32 0.0, %v811
        %813 = vmatprep.mubr.bf16.mxu0 0
        %814 = vmatmul.mubr.bf16.gmra.mxu0 %v664
        %v815 = vpop.f32.mrf.mxu0
        %v816 = vadd.f32 0.0, %v815
        %v817 = vpop.f32.mrf.mxu0
        %v818 = vadd.f32 0.0, %v817
        %v819 = vpop.f32.mrf.mxu0
        %v820 = vadd.f32 0.0, %v819
        %v821 = vpop.f32.mrf.mxu0
        %v822 = vadd.f32 0.0, %v821
        %823 = vmatprep.mubr.bf16.mxu0 0
        %824 = vmatmul.mubr.bf16.gmra.mxu0 %v667
        %v825 = vpop.f32.mrf.mxu0
        %v826 = vadd.f32 0.0, %v825
        %v827 = vpop.f32.mrf.mxu0
        %v828 = vadd.f32 0.0, %v827
        %v829 = vpop.f32.mrf.mxu0
        %v830 = vadd.f32 0.0, %v829
        %v831 = vpop.f32.mrf.mxu0
        %v832 = vadd.f32 0.0, %v831
        %833 = vmatprep.mubr.bf16.mxu0 0
        %834 = vmatmul.mubr.bf16.gmra.mxu0 %v670
        %v835 = vpop.f32.mrf.mxu0
        %v836 = vadd.f32 0.0, %v835
        %v837 = vpop.f32.mrf.mxu0
        %v838 = vadd.f32 0.0, %v837
        %v839 = vpop.f32.mrf.mxu0
        %v840 = vadd.f32 0.0, %v839
        %v841 = vpop.f32.mrf.mxu0
        %v842 = vadd.f32 0.0, %v841
        %843 = vmatprep.mubr.bf16.mxu0 0
        %844 = vmatmul.mubr.bf16.gmra.mxu0 %v673
        %v845 = vpop.f32.mrf.mxu0
        %v846 = vadd.f32 0.0, %v845
        %v847 = vpop.f32.mrf.mxu0
        %v848 = vadd.f32 0.0, %v847
        %v849 = vpop.f32.mrf.mxu0
        %v850 = vadd.f32 0.0, %v849
        %v851 = vpop.f32.mrf.mxu0
        %v852 = vadd.f32 0.0, %v851
        %853 = vmatprep.mubr.bf16.mxu0 0
        %854 = vmatmul.mubr.bf16.gmra.mxu0 %v676
        %v855 = vpop.f32.mrf.mxu0
        %v856 = vadd.f32 0.0, %v855
        %v857 = vpop.f32.mrf.mxu0
        %v858 = vadd.f32 0.0, %v857
        %v859 = vpop.f32.mrf.mxu0
        %v860 = vadd.f32 0.0, %v859
        %v861 = vpop.f32.mrf.mxu0
        %v862 = vadd.f32 0.0, %v861
        %863 = vmatprep.mubr.bf16.mxu0 0
        %864 = vmatmul.mubr.bf16.gmra.mxu0 %v679
        %v865 = vpop.f32.mrf.mxu0
        %v866 = vadd.f32 0.0, %v865
        %v867 = vpop.f32.mrf.mxu0
        %v868 = vadd.f32 0.0, %v867
        %v869 = vpop.f32.mrf.mxu0
        %v870 = vadd.f32 0.0, %v869
        %v871 = vpop.f32.mrf.mxu0
        %v872 = vadd.f32 0.0, %v871
        %873 = vmatprep.mubr.bf16.mxu0 0
        %874 = vmatmul.mubr.bf16.gmra.mxu0 %v682
        %v875 = vpop.f32.mrf.mxu0
        %v876 = vadd.f32 0.0, %v875
        %v877 = vpop.f32.mrf.mxu0
        %v878 = vadd.f32 0.0, %v877
        %v879 = vpop.f32.mrf.mxu0
        %v880 = vadd.f32 0.0, %v879
        %v881 = vpop.f32.mrf.mxu0
        %v882 = vadd.f32 0.0, %v881
        %883 = vdwg.mxu0
        %v884 = vmax.f32 %v726, %v728
        %885 = vmax.xlane.f32.xlu0 %v884
        %v886 = vpop.xlane.xlu0 %885
        %v887 = vmax.f32 %v730, %v732
        %888 = vmax.xlane.f32.xlu0 %v887
        %v889 = vpop.xlane.xlu0 %888
        %v890 = vmax.f32 %v736, %v738
        %891 = vmax.xlane.f32.xlu0 %v890
        %v892 = vpop.xlane.xlu0 %891
        %v893 = vmax.f32 %v740, %v742
        %894 = vmax.xlane.f32.xlu0 %v893
        %v895 = vpop.xlane.xlu0 %894
        %v896 = vmax.f32 %v746, %v748
        %897 = vmax.xlane.f32.xlu0 %v896
        %v898 = vpop.xlane.xlu0 %897
        %v899 = vmax.f32 %v750, %v752
        %900 = vmax.xlane.f32.xlu0 %v899
        %v901 = vpop.xlane.xlu0 %900
        %v902 = vmax.f32 %v756, %v758
        %903 = vmax.xlane.f32.xlu0 %v902
        %v904 = vpop.xlane.xlu0 %903
        %v905 = vmax.f32 %v760, %v762
        %906 = vmax.xlane.f32.xlu0 %v905
        %v907 = vpop.xlane.xlu0 %906
        %v908 = vmax.f32 %v766, %v768
        %909 = vmax.xlane.f32.xlu0 %v908
        %v910 = vpop.xlane.xlu0 %909
        %v911 = vmax.f32 %v770, %v772
        %912 = vmax.xlane.f32.xlu0 %v911
        %v913 = vpop.xlane.xlu0 %912
        %v914 = vmax.f32 %v776, %v778
        %915 = vmax.xlane.f32.xlu0 %v914
        %v916 = vpop.xlane.xlu0 %915
        %v917 = vmax.f32 %v780, %v782
        %918 = vmax.xlane.f32.xlu0 %v917
        %v919 = vpop.xlane.xlu0 %918
        %v920 = vmax.f32 %v786, %v788
        %921 = vmax.xlane.f32.xlu0 %v920
        %v922 = vpop.xlane.xlu0 %921
        %v923 = vmax.f32 %v790, %v792
        %924 = vmax.xlane.f32.xlu0 %v923
        %v925 = vpop.xlane.xlu0 %924
        %v926 = vmax.f32 %v796, %v798
        %927 = vmax.xlane.f32.xlu0 %v926
        %v928 = vpop.xlane.xlu0 %927
        %v929 = vmax.f32 %v800, %v802
        %930 = vmax.xlane.f32.xlu0 %v929
        %v931 = vpop.xlane.xlu0 %930
        %v932 = vmax.f32 %v806, %v808
        %933 = vmax.xlane.f32.xlu0 %v932
        %v934 = vpop.xlane.xlu0 %933
        %v935 = vmax.f32 %v810, %v812
        %936 = vmax.xlane.f32.xlu0 %v935
        %v937 = vpop.xlane.xlu0 %936
        %v938 = vmax.f32 %v816, %v818
        %939 = vmax.xlane.f32.xlu0 %v938
        %v940 = vpop.xlane.xlu0 %939
        %v941 = vmax.f32 %v820, %v822
        %942 = vmax.xlane.f32.xlu0 %v941
        %v943 = vpop.xlane.xlu0 %942
        %v944 = vmax.f32 %v826, %v828
        %945 = vmax.xlane.f32.xlu0 %v944
        %v946 = vpop.xlane.xlu0 %945
        %v947 = vmax.f32 %v830, %v832
        %948 = vmax.xlane.f32.xlu0 %v947
        %v949 = vpop.xlane.xlu0 %948
        %v950 = vmax.f32 %v836, %v838
        %951 = vmax.xlane.f32.xlu0 %v950
        %v952 = vpop.xlane.xlu0 %951
        %v953 = vmax.f32 %v840, %v842
        %954 = vmax.xlane.f32.xlu0 %v953
        %v955 = vpop.xlane.xlu0 %954
        %v956 = vmax.f32 %v846, %v848
        %957 = vmax.xlane.f32.xlu0 %v956
        %v958 = vpop.xlane.xlu0 %957
        %v959 = vmax.f32 %v850, %v852
        %960 = vmax.xlane.f32.xlu0 %v959
        %v961 = vpop.xlane.xlu0 %960
        %v962 = vmax.f32 %v856, %v858
        %963 = vmax.xlane.f32.xlu0 %v962
        %v964 = vpop.xlane.xlu0 %963
        %v965 = vmax.f32 %v860, %v862
        %966 = vmax.xlane.f32.xlu0 %v965
        %v967 = vpop.xlane.xlu0 %966
        %v968 = vmax.f32 %v866, %v868
        %969 = vmax.xlane.f32.xlu0 %v968
        %v970 = vpop.xlane.xlu0 %969
        %v971 = vmax.f32 %v870, %v872
        %972 = vmax.xlane.f32.xlu0 %v971
        %v973 = vpop.xlane.xlu0 %972
        %v974 = vmax.f32 %v876, %v878
        %975 = vmax.xlane.f32.xlu0 %v974
        %v976 = vpop.xlane.xlu0 %975
        %v977 = vmax.f32 %v880, %v882
        %978 = vmax.xlane.f32.xlu0 %v977
        %v979 = vpop.xlane.xlu0 %978
        %v980 = vsub.f32 %v726, %v886
        %v981 = vsub.f32 %v728, %v886
        %v982 = vsub.f32 %v730, %v889
        %v983 = vsub.f32 %v732, %v889
        %v984 = vsub.f32 %v736, %v892
        %v985 = vsub.f32 %v738, %v892
        %v986 = vsub.f32 %v740, %v895
        %v987 = vsub.f32 %v742, %v895
        %v988 = vsub.f32 %v746, %v898
        %v989 = vsub.f32 %v748, %v898
        %v990 = vsub.f32 %v750, %v901
        %v991 = vsub.f32 %v752, %v901
        %v992 = vsub.f32 %v756, %v904
        %v993 = vsub.f32 %v758, %v904
        %v994 = vsub.f32 %v760, %v907
        %v995 = vsub.f32 %v762, %v907
        %v996 = vsub.f32 %v766, %v910
        %v997 = vsub.f32 %v768, %v910
        %v998 = vsub.f32 %v770, %v913
        %v999 = vsub.f32 %v772, %v913
        %v1000 = vsub.f32 %v776, %v916
        %v1001 = vsub.f32 %v778, %v916
        %v1002 = vsub.f32 %v780, %v919
        %v1003 = vsub.f32 %v782, %v919
        %v1004 = vsub.f32 %v786, %v922
        %v1005 = vsub.f32 %v788, %v922
        %v1006 = vsub.f32 %v790, %v925
        %v1007 = vsub.f32 %v792, %v925
        %v1008 = vsub.f32 %v796, %v928
        %v1009 = vsub.f32 %v798, %v928
        %v1010 = vsub.f32 %v800, %v931
        %v1011 = vsub.f32 %v802, %v931
        %v1012 = vsub.f32 %v806, %v934
        %v1013 = vsub.f32 %v808, %v934
        %v1014 = vsub.f32 %v810, %v937
        %v1015 = vsub.f32 %v812, %v937
        %v1016 = vsub.f32 %v816, %v940
        %v1017 = vsub.f32 %v818, %v940
        %v1018 = vsub.f32 %v820, %v943
        %v1019 = vsub.f32 %v822, %v943
        %v1020 = vsub.f32 %v826, %v946
        %v1021 = vsub.f32 %v828, %v946
        %v1022 = vsub.f32 %v830, %v949
        %v1023 = vsub.f32 %v832, %v949
        %v1024 = vsub.f32 %v836, %v952
        %v1025 = vsub.f32 %v838, %v952
        %v1026 = vsub.f32 %v840, %v955
        %v1027 = vsub.f32 %v842, %v955
        %v1028 = vsub.f32 %v846, %v958
        %v1029 = vsub.f32 %v848, %v958
        %v1030 = vsub.f32 %v850, %v961
        %v1031 = vsub.f32 %v852, %v961
        %v1032 = vsub.f32 %v856, %v964
        %v1033 = vsub.f32 %v858, %v964
        %v1034 = vsub.f32 %v860, %v967
        %v1035 = vsub.f32 %v862, %v967
        %v1036 = vsub.f32 %v866, %v970
        %v1037 = vsub.f32 %v868, %v970
        %v1038 = vsub.f32 %v870, %v973
        %v1039 = vsub.f32 %v872, %v973
        %v1040 = vsub.f32 %v876, %v976
        %v1041 = vsub.f32 %v878, %v976
        %v1042 = vsub.f32 %v880, %v979
        %v1043 = vsub.f32 %v882, %v979
        %v1044 = vpack.c.bf16 %v982, %v980
        %v1045 = vpack.c.bf16 %v983, %v981
        %v1046 = vpack.c.bf16 %v986, %v984
        %v1047 = vpack.c.bf16 %v987, %v985
        %v1048 = vpack.c.bf16 %v990, %v988
        %v1049 = vpack.c.bf16 %v991, %v989
        %v1050 = vpack.c.bf16 %v994, %v992
        %v1051 = vpack.c.bf16 %v995, %v993
        %v1052 = vpack.c.bf16 %v998, %v996
        %v1053 = vpack.c.bf16 %v999, %v997
        %v1054 = vpack.c.bf16 %v1002, %v1000
        %v1055 = vpack.c.bf16 %v1003, %v1001
        %v1056 = vpack.c.bf16 %v1006, %v1004
        %v1057 = vpack.c.bf16 %v1007, %v1005
        %v1058 = vpack.c.bf16 %v1010, %v1008
        %v1059 = vpack.c.bf16 %v1011, %v1009
        %v1060 = vpack.c.bf16 %v1014, %v1012
        %v1061 = vpack.c.bf16 %v1015, %v1013
        %v1062 = vpack.c.bf16 %v1018, %v1016
        %v1063 = vpack.c.bf16 %v1019, %v1017
        %v1064 = vpack.c.bf16 %v1022, %v1020
        %v1065 = vpack.c.bf16 %v1023, %v1021
        %v1066 = vpack.c.bf16 %v1026, %v1024
        %v1067 = vpack.c.bf16 %v1027, %v1025
        %v1068 = vpack.c.bf16 %v1030, %v1028
        %v1069 = vpack.c.bf16 %v1031, %v1029
        %v1070 = vpack.c.bf16 %v1034, %v1032
        %v1071 = vpack.c.bf16 %v1035, %v1033
        %v1072 = vpack.c.bf16 %v1038, %v1036
        %v1073 = vpack.c.bf16 %v1039, %v1037
        %v1074 = vpack.c.bf16 %v1042, %v1040
        %v1075 = vpack.c.bf16 %v1043, %v1041
        %v1077 = vmul.bf16 %v1044, 1069105081
        %v1078 = vpow.bf16.pop %v1077
        %v1080 = vmul.bf16 %v1045, 1069105081
        %v1081 = vpow.bf16.pop %v1080
        %v1083 = vmul.bf16 %v1046, 1069105081
        %v1084 = vpow.bf16.pop %v1083
        %v1086 = vmul.bf16 %v1047, 1069105081
        %v1087 = vpow.bf16.pop %v1086
        %v1089 = vmul.bf16 %v1048, 1069105081
        %v1090 = vpow.bf16.pop %v1089
        %v1092 = vmul.bf16 %v1049, 1069105081
        %v1093 = vpow.bf16.pop %v1092
        %v1095 = vmul.bf16 %v1050, 1069105081
        %v1096 = vpow.bf16.pop %v1095
        %v1098 = vmul.bf16 %v1051, 1069105081
        %v1099 = vpow.bf16.pop %v1098
        %v1101 = vmul.bf16 %v1052, 1069105081
        %v1102 = vpow.bf16.pop %v1101
        %v1104 = vmul.bf16 %v1053, 1069105081
        %v1105 = vpow.bf16.pop %v1104
        %v1107 = vmul.bf16 %v1054, 1069105081
        %v1108 = vpow.bf16.pop %v1107
        %v1110 = vmul.bf16 %v1055, 1069105081
        %v1111 = vpow.bf16.pop %v1110
        %v1113 = vmul.bf16 %v1056, 1069105081
        %v1114 = vpow.bf16.pop %v1113
        %v1116 = vmul.bf16 %v1057, 1069105081
        %v1117 = vpow.bf16.pop %v1116
        %v1119 = vmul.bf16 %v1058, 1069105081
        %v1120 = vpow.bf16.pop %v1119
        %v1122 = vmul.bf16 %v1059, 1069105081
        %v1123 = vpow.bf16.pop %v1122
        %v1125 = vmul.bf16 %v1060, 1069105081
        %v1126 = vpow.bf16.pop %v1125
        %v1128 = vmul.bf16 %v1061, 1069105081
        %v1129 = vpow.bf16.pop %v1128
        %v1131 = vmul.bf16 %v1062, 1069105081
        %v1132 = vpow.bf16.pop %v1131
        %v1134 = vmul.bf16 %v1063, 1069105081
        %v1135 = vpow.bf16.pop %v1134
        %v1137 = vmul.bf16 %v1064, 1069105081
        %v1138 = vpow.bf16.pop %v1137
        %v1140 = vmul.bf16 %v1065, 1069105081
        %v1141 = vpow.bf16.pop %v1140
        %v1143 = vmul.bf16 %v1066, 1069105081
        %v1144 = vpow.bf16.pop %v1143
        %v1146 = vmul.bf16 %v1067, 1069105081
        %v1147 = vpow.bf16.pop %v1146
        %v1149 = vmul.bf16 %v1068, 1069105081
        %v1150 = vpow.bf16.pop %v1149
        %v1152 = vmul.bf16 %v1069, 1069105081
        %v1153 = vpow.bf16.pop %v1152
        %v1155 = vmul.bf16 %v1070, 1069105081
        %v1156 = vpow.bf16.pop %v1155
        %v1158 = vmul.bf16 %v1071, 1069105081
        %v1159 = vpow.bf16.pop %v1158
        %v1161 = vmul.bf16 %v1072, 1069105081
        %v1162 = vpow.bf16.pop %v1161
        %v1164 = vmul.bf16 %v1073, 1069105081
        %v1165 = vpow.bf16.pop %v1164
        %v1167 = vmul.bf16 %v1074, 1069105081
        %v1168 = vpow.bf16.pop %v1167
        %v1170 = vmul.bf16 %v1075, 1069105081
        %v1171 = vpow.bf16.pop %v1170
        %v1172 = vunpack.c.l.bf16 %v1078
        %v1173 = vunpack.c.l.bf16 %v1081
        %v1174 = vunpack.c.h.bf16 %v1078
        %v1175 = vunpack.c.h.bf16 %v1081
        %v1176 = vunpack.c.l.bf16 %v1084
        %v1177 = vunpack.c.l.bf16 %v1087
        %v1178 = vunpack.c.h.bf16 %v1084
        %v1179 = vunpack.c.h.bf16 %v1087
        %v1180 = vunpack.c.l.bf16 %v1090
        %v1181 = vunpack.c.l.bf16 %v1093
        %v1182 = vunpack.c.h.bf16 %v1090
        %v1183 = vunpack.c.h.bf16 %v1093
        %v1184 = vunpack.c.l.bf16 %v1096
        %v1185 = vunpack.c.l.bf16 %v1099
        %v1186 = vunpack.c.h.bf16 %v1096
        %v1187 = vunpack.c.h.bf16 %v1099
        %v1188 = vunpack.c.l.bf16 %v1102
        %v1189 = vunpack.c.l.bf16 %v1105
        %v1190 = vunpack.c.h.bf16 %v1102
        %v1191 = vunpack.c.h.bf16 %v1105
        %v1192 = vunpack.c.l.bf16 %v1108
        %v1193 = vunpack.c.l.bf16 %v1111
        %v1194 = vunpack.c.h.bf16 %v1108
        %v1195 = vunpack.c.h.bf16 %v1111
        %v1196 = vunpack.c.l.bf16 %v1114
        %v1197 = vunpack.c.l.bf16 %v1117
        %v1198 = vunpack.c.h.bf16 %v1114
        %v1199 = vunpack.c.h.bf16 %v1117
        %v1200 = vunpack.c.l.bf16 %v1120
        %v1201 = vunpack.c.l.bf16 %v1123
        %v1202 = vunpack.c.h.bf16 %v1120
        %v1203 = vunpack.c.h.bf16 %v1123
        %v1204 = vunpack.c.l.bf16 %v1126
        %v1205 = vunpack.c.l.bf16 %v1129
        %v1206 = vunpack.c.h.bf16 %v1126
        %v1207 = vunpack.c.h.bf16 %v1129
        %v1208 = vunpack.c.l.bf16 %v1132
        %v1209 = vunpack.c.l.bf16 %v1135
        %v1210 = vunpack.c.h.bf16 %v1132
        %v1211 = vunpack.c.h.bf16 %v1135
        %v1212 = vunpack.c.l.bf16 %v1138
        %v1213 = vunpack.c.l.bf16 %v1141
        %v1214 = vunpack.c.h.bf16 %v1138
        %v1215 = vunpack.c.h.bf16 %v1141
        %v1216 = vunpack.c.l.bf16 %v1144
        %v1217 = vunpack.c.l.bf16 %v1147
        %v1218 = vunpack.c.h.bf16 %v1144
        %v1219 = vunpack.c.h.bf16 %v1147
        %v1220 = vunpack.c.l.bf16 %v1150
        %v1221 = vunpack.c.l.bf16 %v1153
        %v1222 = vunpack.c.h.bf16 %v1150
        %v1223 = vunpack.c.h.bf16 %v1153
        %v1224 = vunpack.c.l.bf16 %v1156
        %v1225 = vunpack.c.l.bf16 %v1159
        %v1226 = vunpack.c.h.bf16 %v1156
        %v1227 = vunpack.c.h.bf16 %v1159
        %v1228 = vunpack.c.l.bf16 %v1162
        %v1229 = vunpack.c.l.bf16 %v1165
        %v1230 = vunpack.c.h.bf16 %v1162
        %v1231 = vunpack.c.h.bf16 %v1165
        %v1232 = vunpack.c.l.bf16 %v1168
        %v1233 = vunpack.c.l.bf16 %v1171
        %v1234 = vunpack.c.h.bf16 %v1168
        %v1235 = vunpack.c.h.bf16 %v1171
        %v1236 = vadd.f32 %v1172, %v1173
        %1237 = vadd.xlane.f32.xlu0 %v1236
        %v1238 = vpop.xlane.xlu0 %1237
        %v1239 = vadd.f32 %v1174, %v1175
        %1240 = vadd.xlane.f32.xlu0 %v1239
        %v1241 = vpop.xlane.xlu0 %1240
        %v1242 = vadd.f32 %v1176, %v1177
        %1243 = vadd.xlane.f32.xlu0 %v1242
        %v1244 = vpop.xlane.xlu0 %1243
        %v1245 = vadd.f32 %v1178, %v1179
        %1246 = vadd.xlane.f32.xlu0 %v1245
        %v1247 = vpop.xlane.xlu0 %1246
        %v1248 = vadd.f32 %v1180, %v1181
        %1249 = vadd.xlane.f32.xlu0 %v1248
        %v1250 = vpop.xlane.xlu0 %1249
        %v1251 = vadd.f32 %v1182, %v1183
        %1252 = vadd.xlane.f32.xlu0 %v1251
        %v1253 = vpop.xlane.xlu0 %1252
        %v1254 = vadd.f32 %v1184, %v1185
        %1255 = vadd.xlane.f32.xlu0 %v1254
        %v1256 = vpop.xlane.xlu0 %1255
        %v1257 = vadd.f32 %v1186, %v1187
        %1258 = vadd.xlane.f32.xlu0 %v1257
        %v1259 = vpop.xlane.xlu0 %1258
        %v1260 = vadd.f32 %v1188, %v1189
        %1261 = vadd.xlane.f32.xlu0 %v1260
        %v1262 = vpop.xlane.xlu0 %1261
        %v1263 = vadd.f32 %v1190, %v1191
        %1264 = vadd.xlane.f32.xlu0 %v1263
        %v1265 = vpop.xlane.xlu0 %1264
        %v1266 = vadd.f32 %v1192, %v1193
        %1267 = vadd.xlane.f32.xlu0 %v1266
        %v1268 = vpop.xlane.xlu0 %1267
        %v1269 = vadd.f32 %v1194, %v1195
        %1270 = vadd.xlane.f32.xlu0 %v1269
        %v1271 = vpop.xlane.xlu0 %1270
        %v1272 = vadd.f32 %v1196, %v1197
        %1273 = vadd.xlane.f32.xlu0 %v1272
        %v1274 = vpop.xlane.xlu0 %1273
        %v1275 = vadd.f32 %v1198, %v1199
        %1276 = vadd.xlane.f32.xlu0 %v1275
        %v1277 = vpop.xlane.xlu0 %1276
        %v1278 = vadd.f32 %v1200, %v1201
        %1279 = vadd.xlane.f32.xlu0 %v1278
        %v1280 = vpop.xlane.xlu0 %1279
        %v1281 = vadd.f32 %v1202, %v1203
        %1282 = vadd.xlane.f32.xlu0 %v1281
        %v1283 = vpop.xlane.xlu0 %1282
        %v1284 = vadd.f32 %v1204, %v1205
        %1285 = vadd.xlane.f32.xlu0 %v1284
        %v1286 = vpop.xlane.xlu0 %1285
        %v1287 = vadd.f32 %v1206, %v1207
        %1288 = vadd.xlane.f32.xlu0 %v1287
        %v1289 = vpop.xlane.xlu0 %1288
        %v1290 = vadd.f32 %v1208, %v1209
        %1291 = vadd.xlane.f32.xlu0 %v1290
        %v1292 = vpop.xlane.xlu0 %1291
        %v1293 = vadd.f32 %v1210, %v1211
        %1294 = vadd.xlane.f32.xlu0 %v1293
        %v1295 = vpop.xlane.xlu0 %1294
        %v1296 = vadd.f32 %v1212, %v1213
        %1297 = vadd.xlane.f32.xlu0 %v1296
        %v1298 = vpop.xlane.xlu0 %1297
        %v1299 = vadd.f32 %v1214, %v1215
        %1300 = vadd.xlane.f32.xlu0 %v1299
        %v1301 = vpop.xlane.xlu0 %1300
        %v1302 = vadd.f32 %v1216, %v1217
        %1303 = vadd.xlane.f32.xlu0 %v1302
        %v1304 = vpop.xlane.xlu0 %1303
        %v1305 = vadd.f32 %v1218, %v1219
        %1306 = vadd.xlane.f32.xlu0 %v1305
        %v1307 = vpop.xlane.xlu0 %1306
        %v1308 = vadd.f32 %v1220, %v1221
        %1309 = vadd.xlane.f32.xlu0 %v1308
        %v1310 = vpop.xlane.xlu0 %1309
        %v1311 = vadd.f32 %v1222, %v1223
        %1312 = vadd.xlane.f32.xlu0 %v1311
        %v1313 = vpop.xlane.xlu0 %1312
        %v1314 = vadd.f32 %v1224, %v1225
        %1315 = vadd.xlane.f32.xlu0 %v1314
        %v1316 = vpop.xlane.xlu0 %1315
        %v1317 = vadd.f32 %v1226, %v1227
        %1318 = vadd.xlane.f32.xlu0 %v1317
        %v1319 = vpop.xlane.xlu0 %1318
        %v1320 = vadd.f32 %v1228, %v1229
        %1321 = vadd.xlane.f32.xlu0 %v1320
        %v1322 = vpop.xlane.xlu0 %1321
        %v1323 = vadd.f32 %v1230, %v1231
        %1324 = vadd.xlane.f32.xlu0 %v1323
        %v1325 = vpop.xlane.xlu0 %1324
        %v1326 = vadd.f32 %v1232, %v1233
        %1327 = vadd.xlane.f32.xlu0 %v1326
        %v1328 = vpop.xlane.xlu0 %1327
        %v1329 = vadd.f32 %v1234, %v1235
        %1330 = vadd.xlane.f32.xlu0 %v1329
        %v1331 = vpop.xlane.xlu0 %1330
        %v1332 = vrcp.pop %v1238
        %v1333 = vrcp.pop %v1241
        %v1334 = vrcp.pop %v1244
        %v1335 = vrcp.pop %v1247
        %v1336 = vrcp.pop %v1250
        %v1337 = vrcp.pop %v1253
        %v1338 = vrcp.pop %v1256
        %v1339 = vrcp.pop %v1259
        %v1340 = vrcp.pop %v1262
        %v1341 = vrcp.pop %v1265
        %v1342 = vrcp.pop %v1268
        %v1343 = vrcp.pop %v1271
        %v1344 = vrcp.pop %v1274
        %v1345 = vrcp.pop %v1277
        %v1346 = vrcp.pop %v1280
        %v1347 = vrcp.pop %v1283
        %v1348 = vrcp.pop %v1286
        %v1349 = vrcp.pop %v1289
        %v1350 = vrcp.pop %v1292
        %v1351 = vrcp.pop %v1295
        %v1352 = vrcp.pop %v1298
        %v1353 = vrcp.pop %v1301
        %v1354 = vrcp.pop %v1304
        %v1355 = vrcp.pop %v1307
        %v1356 = vrcp.pop %v1310
        %v1357 = vrcp.pop %v1313
        %v1358 = vrcp.pop %v1316
        %v1359 = vrcp.pop %v1319
        %v1360 = vrcp.pop %v1322
        %v1361 = vrcp.pop %v1325
        %v1362 = vrcp.pop %v1328
        %v1363 = vrcp.pop %v1331
        %v1364 = vpack.c.bf16 %v1333, %v1332
        %v1365 = vpack.c.bf16 %v1335, %v1334
        %v1366 = vpack.c.bf16 %v1337, %v1336
        %v1367 = vpack.c.bf16 %v1339, %v1338
        %v1368 = vpack.c.bf16 %v1341, %v1340
        %v1369 = vpack.c.bf16 %v1343, %v1342
        %v1370 = vpack.c.bf16 %v1345, %v1344
        %v1371 = vpack.c.bf16 %v1347, %v1346
        %v1372 = vpack.c.bf16 %v1349, %v1348
        %v1373 = vpack.c.bf16 %v1351, %v1350
        %v1374 = vpack.c.bf16 %v1353, %v1352
        %v1375 = vpack.c.bf16 %v1355, %v1354
        %v1376 = vpack.c.bf16 %v1357, %v1356
        %v1377 = vpack.c.bf16 %v1359, %v1358
        %v1378 = vpack.c.bf16 %v1361, %v1360
        %v1379 = vpack.c.bf16 %v1363, %v1362
        %v1380 = vmul.bf16 %v1078, %v1364
        %v1381 = vmul.bf16 %v1081, %v1364
        %v1382 = vmul.bf16 %v1084, %v1365
        %v1383 = vmul.bf16 %v1087, %v1365
        %v1384 = vmul.bf16 %v1090, %v1366
        %v1385 = vmul.bf16 %v1093, %v1366
        %v1386 = vmul.bf16 %v1096, %v1367
        %v1387 = vmul.bf16 %v1099, %v1367
        %v1388 = vmul.bf16 %v1102, %v1368
        %v1389 = vmul.bf16 %v1105, %v1368
        %v1390 = vmul.bf16 %v1108, %v1369
        %v1391 = vmul.bf16 %v1111, %v1369
        %v1392 = vmul.bf16 %v1114, %v1370
        %v1393 = vmul.bf16 %v1117, %v1370
        %v1394 = vmul.bf16 %v1120, %v1371
        %v1395 = vmul.bf16 %v1123, %v1371
        %v1396 = vmul.bf16 %v1126, %v1372
        %v1397 = vmul.bf16 %v1129, %v1372
        %v1398 = vmul.bf16 %v1132, %v1373
        %v1399 = vmul.bf16 %v1135, %v1373
        %v1400 = vmul.bf16 %v1138, %v1374
        %v1401 = vmul.bf16 %v1141, %v1374
        %v1402 = vmul.bf16 %v1144, %v1375
        %v1403 = vmul.bf16 %v1147, %v1375
        %v1404 = vmul.bf16 %v1150, %v1376
        %v1405 = vmul.bf16 %v1153, %v1376
        %v1406 = vmul.bf16 %v1156, %v1377
        %v1407 = vmul.bf16 %v1159, %v1377
        %v1408 = vmul.bf16 %v1162, %v1378
        %v1409 = vmul.bf16 %v1165, %v1378
        %v1410 = vmul.bf16 %v1168, %v1379
        %v1411 = vmul.bf16 %v1171, %v1379
        %v1412 = vld [vmem:[#allocation2 + $0x10] sm:$0xff]
        %v1413 = vld [vmem:[#allocation2 + $0x18] sm:$0xff]
        %v1414 = vld [vmem:[#allocation2 + $0x20] sm:$0xff]
        %v1415 = vld [vmem:[#allocation2 + $0x28] sm:$0xff]
        %v1420 = vunpack.c.l.b16 %v1412
        %v1421 = vunpack.c.h.b16 %v1412
        %v1422 = vunpack.c.l.b16 %v1413
        %v1423 = vunpack.c.h.b16 %v1413
        %v1424 = vunpack.c.l.b16 %v1414
        %v1425 = vunpack.c.h.b16 %v1414
        %v1426 = vunpack.c.l.b16 %v1415
        %v1427 = vunpack.c.h.b16 %v1415
        %v1428 = vpack.c.b16 %v1422, %v1420
        %v1429 = vpack.c.b16 %v1423, %v1421
        %v1430 = vpack.c.b16 %v1426, %v1424
        %v1431 = vpack.c.b16 %v1427, %v1425
        %1436 = vmatprep.subr.bf16.mxu0 %v1395
        %1437 = vmatpush1.bf16.xpose.msra.mxu0 %v1394
        %1438 = vmatprep.subr.bf16.mxu0 %v1393
        %1439 = vmatpush1.bf16.xpose.msra.mxu0 %v1392
        %1440 = vmatprep.subr.bf16.mxu0 %v1391
        %1441 = vmatpush1.bf16.xpose.msra.mxu0 %v1390
        %1442 = vmatprep.subr.bf16.mxu0 %v1389
        %1443 = vmatpush1.bf16.xpose.msra.mxu0 %v1388
        %1444 = vmatprep.subr.bf16.mxu0 %v1387
        %1445 = vmatpush1.bf16.xpose.msra.mxu0 %v1386
        %1446 = vmatprep.subr.bf16.mxu0 %v1385
        %1447 = vmatpush1.bf16.xpose.msra.mxu0 %v1384
        %1448 = vmatprep.subr.bf16.mxu0 %v1383
        %1449 = vmatpush1.bf16.xpose.msra.mxu0 %v1382
        %1450 = vmatprep.subr.bf16.mxu0 %v1381
        %1451 = vmatpush1.bf16.xpose.msra.mxu0 %v1380
        %1452 = vmatprep.subr.bf16.mxu0 %v1411
        %1453 = vmatpush2.bf16.xpose.msra.mxu0 %v1410
        %1454 = vmatprep.subr.bf16.mxu0 %v1409
        %1455 = vmatpush2.bf16.xpose.msra.mxu0 %v1408
        %1456 = vmatprep.subr.bf16.mxu0 %v1407
        %1457 = vmatpush2.bf16.xpose.msra.mxu0 %v1406
        %1458 = vmatprep.subr.bf16.mxu0 %v1405
        %1459 = vmatpush2.bf16.xpose.msra.mxu0 %v1404
        %1460 = vmatprep.subr.bf16.mxu0 %v1403
        %1461 = vmatpush2.bf16.xpose.msra.mxu0 %v1402
        %1462 = vmatprep.subr.bf16.mxu0 %v1401
        %1463 = vmatpush2.bf16.xpose.msra.mxu0 %v1400
        %1464 = vmatprep.subr.bf16.mxu0 %v1399
        %1465 = vmatpush2.bf16.xpose.msra.mxu0 %v1398
        %1466 = vmatprep.subr.bf16.mxu0 %v1397
        %1467 = vmatpush2.bf16.xpose.msra.mxu0 %v1396
        %1468 = vmatprep.mubr.bf16.mxu0 %v1429
        %1469 = vmatmul.mubr.bf16.gmra.mxu0 %v1428
        %v1470 = vpop.f32.mrf.mxu0
        %v1471 = vadd.f32 0.0, %v1470
        %v1472 = vpop.f32.mrf.mxu0
        %v1473 = vadd.f32 0.0, %v1472
        %v1474 = vpop.f32.mrf.mxu0
        %v1475 = vadd.f32 0.0, %v1474
        %v1476 = vpop.f32.mrf.mxu0
        %v1477 = vadd.f32 0.0, %v1476
        %1478 = vmatprep.mubr.bf16.mxu0 %v1431
        %1479 = vmatmul.mubr.bf16.gmra.mxu0 %v1430
        %v1480 = vpop.f32.mrf.mxu0
        %v1481 = vadd.f32 0.0, %v1480
        %v1482 = vpop.f32.mrf.mxu0
        %v1483 = vadd.f32 0.0, %v1482
        %v1484 = vpop.f32.mrf.mxu0
        %v1485 = vadd.f32 0.0, %v1484
        %v1486 = vpop.f32.mrf.mxu0
        %v1487 = vadd.f32 0.0, %v1486
        %1488 = vdwg.mxu0
        %s1489 = sld [smem:[#allocation3]]
        %v1490 = vstv %s1489
        %v1491 = vmul.f32 %v1490, %v1471
        %v1492 = vmul.f32 %v1490, %v1473
        %v1493 = vmul.f32 %v1490, %v1475
        %v1494 = vmul.f32 %v1490, %v1477
        %v1495 = vmul.f32 %v1490, %v1481
        %v1496 = vmul.f32 %v1490, %v1483
        %v1497 = vmul.f32 %v1490, %v1485
        %v1498 = vmul.f32 %v1490, %v1487
        %v1499 = vadd.f32 %v1491, %v463
        %v1500 = vadd.f32 %v1492, %v464
        %v1501 = vadd.f32 %v1493, %v465
        %v1502 = vadd.f32 %v1494, %v466
        %v1503 = vadd.f32 %v1495, %v467
        %v1504 = vadd.f32 %v1496, %v468
        %v1505 = vadd.f32 %v1497, %v469
        %v1506 = vadd.f32 %v1498, %v470
        %1507 = vst [vmem:[%s267] sm:$0xff] %v1499
        %1508 = vst [vmem:[%s267 + $0x8] sm:$0xff] %v1500
        %1509 = vst [vmem:[%s267 + $0x10] sm:$0xff] %v1501
        %1510 = vst [vmem:[%s267 + $0x18] sm:$0xff] %v1502
        %1511 = vst [vmem:[%s267 + $0x20] sm:$0xff] %v1503
        %1512 = vst [vmem:[%s267 + $0x28] sm:$0xff] %v1504
        %1513 = vst [vmem:[%s267 + $0x30] sm:$0xff] %v1505
        %1514 = vst [vmem:[%s267 + $0x38] sm:$0xff] %v1506
        %s1515 = sand.u32 %s175, 1
        %s1516 = scalar_lea.sflag [#allocation6], %s1515
        %s1517 = sand.u32 %s175, 1
        %s1518 = smul.addr %s1517, 64
        %s1519 = scalar_lea.vmem [#allocation7], %s1518
        // Predicated region
        $region53: #{tpu_custom_call.1} parent=43 // pred_check
          %p1520 = pneg %p185
        $region54: #{tpu_custom_call.1} parent=43 // pred_check_branch
          %1522 = sbr.rel (%p1520) target = $region56
        $region55: #{tpu_custom_call.1} parent=43 // pred_region
          %s1523 = smul.u32 2, %s27
          %s1525 = ssub.s32 1024, 1024
          %1526 = vsyncadd %s1516, %s1525
          %s1527 = smul.addr %s26, 8
          %s1528 = sadd.s32 %s1523, %s1527
          %s1529 = smul.addr %s1528, 128
          %s1530 = scalar_lea.hbm %s6, %s1529
          %s1531 = sshll.u32 %s1519, 4
          %s1532 = int_to_ptr.vmem [resolvable:$true] %s1531
          %1537 = dma.vmem_to_hbm [thread:$0]  %s1532, 1024, %s1530, %s1516, 256, 256, 16
        $region56: #{tpu_custom_call.1} parent=43 // pred_fallthru
          _
      $region44: #{tpu_custom_call.1} parent=5 // pred_fallthru
        _
      %p1538 = scmp.le.s32.totalorder 2, %s17
      // Predicated region
      $region57: #{tpu_custom_call.1} parent=5 // pred_check
        %p1539 = pneg %p1538
      $region58: #{tpu_custom_call.1} parent=5 // pred_check_branch
        %1541 = sbr.rel (%p1539) target = $region60
      $region59: #{tpu_custom_call.1} parent=5 // pred_region
        %s1542 = ssub.s32 %s17, 2
        // Predicated region
        $region61: #{tpu_custom_call.1} parent=59 // pred_check
          %p1543 = pneg %p191
        $region62: #{tpu_custom_call.1} parent=59 // pred_check_branch
          %1545 = sbr.rel (%p1543) target = $region64
        $region63: #{tpu_custom_call.1} parent=59 // pred_region
          %s1546 = sand.u32 %s176, 1
          %s1547 = scalar_lea.sflag [#allocation6], %s1546
          %s1548 = sand.u32 %s176, 1
          %s1549 = smul.addr %s1548, 64
          %s1550 = scalar_lea.vmem [#allocation7], %s1549
          %1551 = dma.done %s1547, 1024
        $region64: #{tpu_custom_call.1} parent=59 // pred_fallthru
          _
      $region60: #{tpu_custom_call.1} parent=5 // pred_fallthru
        _
    $region6: #{tpu_custom_call.1} parent=1 // loop_footer
      %s21 = sadd.s32 1, %s17
    $region7: #{tpu_custom_call.1} parent=1 // loop_footer_branch
      %16 = sbr.rel target = $region3
    $region8: #{tpu_custom_call.1} parent=1 // loop_exit
      _
    %1552 = vsyncpa [#allocation5], 1
    %s1553 = scalar_lea.sflag [#allocation5], 1
    %1554 = vsyncpa %s1553, 1
    %1555 = vsyncpa [#allocation6], 1
    %s1556 = scalar_lea.sflag [#allocation6], 1
    %1557 = vsyncpa %s1556, 1

</llo_original>
